<compile_context>
chip_gen: v7x
topology: tpu7x:2x2x1
jax: 0.10.0
libtpu: 0.0.40
codegen_flags: <defaults>
</compile_context>

<pallas_src>
import functools
import math

import jax
import jax.numpy as jnp
from jax.experimental import pallas as pl
from jax.experimental.pallas import tpu as pltpu

# ----------------------------- configuration ------------------------------
N_INOUT = 3
N_TIME_EMBEDDING = 128
N_HIDDEN = 64
N_LAYERS = 2
MULT = 1
LN_EPS = 1e-5       # torch.nn.LayerNorm default
OUT_PAD = 128       # lane-dense padded output width (sliced back to N_INOUT)


def _round_up(v, m):
    return ((v + m - 1) // m) * m


# ------------------------------ the kernel --------------------------------
def _dense_residual_kernel(
    n_layers, n_hidden,
    x_ref, t_ref, freqs_ref,
    w_in_ref, b_in_ref,
    film_w_ref, film_b_ref,
    w1_ref, b1_ref, w2_ref, b2_ref, gamma_ref,
    w_out_ref, b_out_ref,
    out_ref,
):
    f32 = jnp.float32

    # --- SinusoidalTimeEmbedding, lane-dense (no cross-lane concatenate) ---
    # TODO(synk): SinusoidalTimeEmbedding source not provided; assumed
    #             emb = concat(sin(t*freqs), cos(t*freqs)) with standard freqs.
    t = t_ref[...]                              # (TB, 1)
    args = t * freqs_ref[...]                   # (TB, 128)  freqs tiled twice on host
    lane = jax.lax.broadcasted_iota(jnp.int32, args.shape, 1)
    half = args.shape[-1] // 2
    temb = jnp.where(lane < half, jnp.sin(args), jnp.cos(args))   # (TB, 128)

    # --- input projection (K=3): VPU FMAs, no MXU round trip ---
    x = x_ref[...]                              # (TB, n_inout)
    w_in = w_in_ref[...]                        # (n_inout, n_hidden)
    h = b_in_ref[...]                           # (1, n_hidden), broadcasts below
    for i in range(x.shape[-1]):
        h = h + x[:, i:i + 1] * w_in[i:i + 1, :]

    # --- FiLM conditioning for ALL layers fused into one N=256 matmul ---
    # TODO(synk): FilmLayer source not provided; assumed standard
    #             out = norm * (W_s @ temb + b_s) + (W_h @ temb + b_h).
    film = jnp.dot(temb, film_w_ref[...], preferred_element_type=f32) + film_b_ref[...]

    # --- residual layers ---
    for layer in range(n_layers):
        # LayerNorm (no affine): single-pass stats (mean & mean-of-squares).
        m1 = jnp.mean(h, axis=-1, keepdims=True)
        m2 = jnp.mean(h * h, axis=-1, keepdims=True)
        var = jnp.maximum(m2 - m1 * m1, 0.0)
        h_norm = (h - m1) * jax.lax.rsqrt(var + LN_EPS)

        base = 2 * layer * n_hidden
        scale = film[:, base:base + n_hidden]
        shift = film[:, base + n_hidden:base + 2 * n_hidden]
        cond = h_norm * scale + shift

        # branch: Linear -> ReLU -> Linear, scaled by gamma, residual add.
        b1 = jnp.dot(cond, w1_ref[layer], preferred_element_type=f32) + b1_ref[layer]
        b1 = jnp.maximum(b1, 0.0)
        b2 = jnp.dot(b1, w2_ref[layer], preferred_element_type=f32) + b2_ref[layer]
        h = h + b2 * gamma_ref[layer]

    # --- output head: lane-dense (padded to 128 cols), unmasked stores ---
    out_ref[...] = jnp.dot(h, w_out_ref[...], preferred_element_type=f32) + b_out_ref[...]


# ------------------------------ the wrapper -------------------------------
def dense_residual_forward(x, t, params, *, batch_tile=None):
    """x: (B, n_inout) f32, t: (B,) f32 diffusion timesteps."""
    B = x.shape[0]
    if batch_tile is None:
        # multiple of 8; capped so double-buffered activation tiles stay well
        # within v7x's 64 MiB VMEM (per-row activation footprint ~1.5 KB f32).
        batch_tile = min(512, _round_up(B, 8))
    tb = batch_tile
    B_pad = _round_up(max(B, tb), tb)

    x_p = jnp.pad(x.astype(jnp.float32), ((0, B_pad - B), (0, 0)))
    t_p = jnp.pad(t.reshape(B, 1).astype(jnp.float32), ((0, B_pad - B), (0, 0)))

    # ---- host-side packing / padding ----
    # frequencies tiled twice -> lane-dense (1, 128) for masked sin/cos selection
    freqs_full = jnp.concatenate([params["freqs"], params["freqs"]], axis=-1)
    # fused FiLM weight: per layer [scale | shift] -> (128, n_layers*2*64) = (128, 256)
    film_w = jnp.concatenate(
        [jnp.concatenate([params["film_sw"][l], params["film_hw"][l]], axis=-1)
         for l in range(N_LAYERS)], axis=-1)
    film_b = jnp.concatenate(
        [jnp.concatenate([params["film_sb"][l], params["film_hb"][l]], axis=-1)
         for l in range(N_LAYERS)], axis=-1)
    # lane-dense padded output head
    w_out_p = jnp.zeros((N_HIDDEN, OUT_PAD), jnp.float32).at[:, :N_INOUT].set(params["w_out"])
    b_out_p = jnp.zeros((1, OUT_PAD), jnp.float32).at[:, :N_INOUT].set(params["b_out"])

    inputs = (
        x_p, t_p, freqs_full,
        params["w_in"], params["b_in"],
        film_w, film_b,
        params["w1"], params["b1"], params["w2"], params["b2"], params["gamma"],
        w_out_p, b_out_p,
    )

    def batch_spec(feat):
        return pl.BlockSpec((tb, feat), lambda i: (i, 0))

    def const_spec(arr):
        return pl.BlockSpec(arr.shape, lambda i, nd=arr.ndim: (0,) * nd)

    in_specs = [
        batch_spec(N_INOUT),            # x
        batch_spec(1),                  # t
        const_spec(freqs_full),
        const_spec(params["w_in"]),
        const_spec(params["b_in"]),
        const_spec(film_w),
        const_spec(film_b),
        const_spec(params["w1"]),
        const_spec(params["b1"]),
        const_spec(params["w2"]),
        const_spec(params["b2"]),
        const_spec(params["gamma"]),
        const_spec(w_out_p),
        const_spec(b_out_p),
    ]

    kernel = functools.partial(_dense_residual_kernel, N_LAYERS, N_HIDDEN)

    out_padded = pl.pallas_call(
        kernel,
        out_shape=jax.ShapeDtypeStruct((B_pad, OUT_PAD), jnp.float32),
        grid=(B_pad // tb,),
        in_specs=in_specs,
        out_specs=pl.BlockSpec((tb, OUT_PAD), lambda i: (i, 0)),
        compiler_params=pltpu.CompilerParams(
            dimension_semantics=("parallel",)),   # dual-TC sharding on v7x
    )(*inputs)

    return out_padded[:B, :N_INOUT]


# ------------------------- deterministic parameters ------------------------
def init_params(key):
    def linear(key, fan_in, fan_out):
        # mimic torch.nn.Linear default init (uniform +/- 1/sqrt(fan_in)),
        # stored transposed as (fan_in, fan_out).
        kw, kb = jax.random.split(key)
        bound = 1.0 / math.sqrt(fan_in)
        w = jax.random.uniform(kw, (fan_in, fan_out), jnp.float32, -bound, bound)
        b = jax.random.uniform(kb, (1, fan_out), jnp.float32, -bound, bound)
        return w, b

    keys = jax.random.split(key, 2 + 4 * N_LAYERS)
    ki = iter(range(len(keys)))

    params = {}

    half = N_TIME_EMBEDDING // 2
    exponent = -math.log(10000.0) / (half - 1)
    params["freqs"] = jnp.exp(exponent * jnp.arange(half, dtype=jnp.float32)).reshape(1, half)

    params["w_in"], params["b_in"] = linear(keys[next(ki)], N_INOUT, N_HIDDEN)

    film_sw, film_sb, film_hw, film_hb = [], [], [], []
    w1s, b1s, w2s, b2s, gammas = [], [], [], [], []
    for _ in range(N_LAYERS):
        sw, sb = linear(keys[next(ki)], N_TIME_EMBEDDING, N_HIDDEN)
        hw, hb = linear(keys[next(ki)], N_TIME_EMBEDDING, N_HIDDEN)
        w1, b1 = linear(keys[next(ki)], N_HIDDEN, N_HIDDEN * MULT)
        w2, b2 = linear(keys[next(ki)], N_HIDDEN * MULT, N_HIDDEN)
        film_sw.append(sw); film_sb.append(sb)
        film_hw.append(hw); film_hb.append(hb)
        w1s.append(w1); b1s.append(b1); w2s.append(w2); b2s.append(b2)
        gammas.append(jnp.full((1, N_HIDDEN), 1e-6, jnp.float32))

    params["film_sw"] = jnp.stack(film_sw); params["film_sb"] = jnp.stack(film_sb)
    params["film_hw"] = jnp.stack(film_hw); params["film_hb"] = jnp.stack(film_hb)
    params["w1"] = jnp.stack(w1s); params["b1"] = jnp.stack(b1s)
    params["w2"] = jnp.stack(w2s); params["b2"] = jnp.stack(b2s)
    params["gamma"] = jnp.stack(gammas)

    params["w_out"], params["b_out"] = linear(keys[next(ki)], N_HIDDEN, N_INOUT)
    return params


# ----------------------------- pure-JAX reference ---------------------------
def reference_forward(x, t, p):
    B = x.shape[0]
    args = t.reshape(B, 1) * p["freqs"]
    temb = jnp.concatenate([jnp.sin(args), jnp.cos(args)], axis=-1)
    h = x @ p["w_in"] + p["b_in"]
    for l in range(N_LAYERS):
        mean = jnp.mean(h, axis=-1, keepdims=True)
        var = jnp.mean((h - mean) ** 2, axis=-1, keepdims=True)
        hn = (h - mean) / jnp.sqrt(var + LN_EPS)
        scale = temb @ p["film_sw"][l] + p["film_sb"][l]
        shift = temb @ p["film_hw"][l] + p["film_hb"][l]
        cond = hn * scale + shift
        b = jnp.maximum(cond @ p["w1"][l] + p["b1"][l], 0.0)
        b = b @ p["w2"][l] + p["b2"][l]
        h = h + b * p["gamma"][l]
    return h @ p["w_out"] + p["b_out"]


# ---------------------------------- main -----------------------------------
if __name__ == "__main__":
    key = jax.random.PRNGKey(0)
    kx, kt, kp = jax.random.split(key, 3)

    B = 8
    x = jax.random.normal(kx, (B, N_INOUT), jnp.float32)
    t = jax.random.uniform(kt, (B,), jnp.float32, 0.0, 1000.0)
    params = init_params(kp)

    out = dense_residual_forward(x, t, params)
    out = jax.block_until_ready(out)

    ref = reference_forward(x, t, params)
    assert out.shape == (B, N_INOUT)
    assert jnp.allclose(out, ref, atol=1e-4, rtol=1e-4), (
        f"max abs diff {jnp.max(jnp.abs(out - ref))}")

    print("KERNEL_OK")
</pallas_src>

<mosaic_0001>
module attributes {stable_mosaic.version = 11 : i64} {
  func.func @_dense_residual_kernel(%arg0: i32, %arg1: memref<8x3xf32, #tpu.memory_space<vmem>>, %arg2: memref<8x1xf32, #tpu.memory_space<vmem>>, %arg3: memref<1x128xf32, #tpu.memory_space<vmem>>, %arg4: memref<3x64xf32, #tpu.memory_space<vmem>>, %arg5: memref<1x64xf32, #tpu.memory_space<vmem>>, %arg6: memref<128x256xf32, #tpu.memory_space<vmem>>, %arg7: memref<1x256xf32, #tpu.memory_space<vmem>>, %arg8: memref<2x64x64xf32, #tpu.memory_space<vmem>>, %arg9: memref<2x1x64xf32, #tpu.memory_space<vmem>>, %arg10: memref<2x64x64xf32, #tpu.memory_space<vmem>>, %arg11: memref<2x1x64xf32, #tpu.memory_space<vmem>>, %arg12: memref<2x1x64xf32, #tpu.memory_space<vmem>>, %arg13: memref<64x128xf32, #tpu.memory_space<vmem>>, %arg14: memref<1x128xf32, #tpu.memory_space<vmem>>, %arg15: memref<8x128xf32, #tpu.memory_space<vmem>>) attributes {dimension_semantics = [#tpu.dimension_semantics<parallel>], iteration_bounds = array<i64: 1>, scalar_prefetch = 0 : i64, scratch_operands = 0 : i64, tpu.core_type = #tpu.core_type<tc>, window_params = [{transform_indices = @transform_0, window_bounds = array<i64: 8, 3>}, {transform_indices = @transform_1, window_bounds = array<i64: 8, 1>}, {pipeline_mode = #tpu.pipeline_mode<synchronous>, transform_indices = @transform_2, window_bounds = array<i64: 1, 128>}, {pipeline_mode = #tpu.pipeline_mode<synchronous>, transform_indices = @transform_3, window_bounds = array<i64: 3, 64>}, {pipeline_mode = #tpu.pipeline_mode<synchronous>, transform_indices = @transform_4, window_bounds = array<i64: 1, 64>}, {pipeline_mode = #tpu.pipeline_mode<synchronous>, transform_indices = @transform_5, window_bounds = array<i64: 128, 256>}, {pipeline_mode = #tpu.pipeline_mode<synchronous>, transform_indices = @transform_6, window_bounds = array<i64: 1, 256>}, {pipeline_mode = #tpu.pipeline_mode<synchronous>, transform_indices = @transform_7, window_bounds = array<i64: 2, 64, 64>}, {pipeline_mode = #tpu.pipeline_mode<synchronous>, transform_indices = @transform_8, window_bounds = array<i64: 2, 1, 64>}, {pipeline_mode = #tpu.pipeline_mode<synchronous>, transform_indices = @transform_9, window_bounds = array<i64: 2, 64, 64>}, {pipeline_mode = #tpu.pipeline_mode<synchronous>, transform_indices = @transform_10, window_bounds = array<i64: 2, 1, 64>}, {pipeline_mode = #tpu.pipeline_mode<synchronous>, transform_indices = @transform_11, window_bounds = array<i64: 2, 1, 64>}, {pipeline_mode = #tpu.pipeline_mode<synchronous>, transform_indices = @transform_12, window_bounds = array<i64: 64, 128>}, {pipeline_mode = #tpu.pipeline_mode<synchronous>, transform_indices = @transform_13, window_bounds = array<i64: 1, 128>}, {transform_indices = @transform_14, window_bounds = array<i64: 8, 128>}]} {
    %c0 = arith.constant 0 : index
    %c0_0 = arith.constant 0 : index
    %0 = vector.load %arg2[%c0, %c0_0] : memref<8x1xf32, #tpu.memory_space<vmem>>, vector<8x1xf32>
    %c0_1 = arith.constant 0 : index
    %c0_2 = arith.constant 0 : index
    %1 = vector.load %arg3[%c0_1, %c0_2] : memref<1x128xf32, #tpu.memory_space<vmem>>, vector<1x128xf32>
    %2 = vector.broadcast %0 : vector<8x1xf32> to vector<8x128xf32>
    %3 = vector.broadcast %1 : vector<1x128xf32> to vector<8x128xf32>
    %4 = arith.mulf %2, %3 : vector<8x128xf32>
    %5 = tpu.iota {dimensions = array<i32: 1>} : vector<8x128xi32>
    %c64_i32 = arith.constant 64 : i32
    %6 = vector.broadcast %c64_i32 : i32 to vector<8x128xi32>
    %7 = arith.cmpi slt, %5, %6 : vector<8x128xi32>
    %8 = math.sin %4 : vector<8x128xf32>
    %9 = math.cos %4 : vector<8x128xf32>
    %10 = arith.select %7, %8, %9 : vector<8x128xi1>, vector<8x128xf32>
    %c0_3 = arith.constant 0 : index
    %c0_4 = arith.constant 0 : index
    %11 = vector.load %arg1[%c0_3, %c0_4] : memref<8x3xf32, #tpu.memory_space<vmem>>, vector<8x3xf32>
    %c0_5 = arith.constant 0 : index
    %c0_6 = arith.constant 0 : index
    %12 = vector.load %arg4[%c0_5, %c0_6] : memref<3x64xf32, #tpu.memory_space<vmem>>, vector<3x64xf32>
    %c0_7 = arith.constant 0 : index
    %c0_8 = arith.constant 0 : index
    %13 = vector.load %arg5[%c0_7, %c0_8] : memref<1x64xf32, #tpu.memory_space<vmem>>, vector<1x64xf32>
    %14 = vector.extract_strided_slice %11 {offsets = [0, 0], sizes = [8, 1], strides = [1, 1]} : vector<8x3xf32> to vector<8x1xf32>
    %15 = vector.extract_strided_slice %12 {offsets = [0, 0], sizes = [1, 64], strides = [1, 1]} : vector<3x64xf32> to vector<1x64xf32>
    %16 = vector.broadcast %14 : vector<8x1xf32> to vector<8x64xf32>
    %17 = vector.broadcast %15 : vector<1x64xf32> to vector<8x64xf32>
    %18 = arith.mulf %16, %17 : vector<8x64xf32>
    %19 = vector.broadcast %13 : vector<1x64xf32> to vector<8x64xf32>
    %20 = arith.addf %19, %18 : vector<8x64xf32>
    %21 = vector.extract_strided_slice %11 {offsets = [0, 1], sizes = [8, 1], strides = [1, 1]} : vector<8x3xf32> to vector<8x1xf32>
    %22 = vector.extract_strided_slice %12 {offsets = [1, 0], sizes = [1, 64], strides = [1, 1]} : vector<3x64xf32> to vector<1x64xf32>
    %23 = vector.broadcast %21 : vector<8x1xf32> to vector<8x64xf32>
    %24 = vector.broadcast %22 : vector<1x64xf32> to vector<8x64xf32>
    %25 = arith.mulf %23, %24 : vector<8x64xf32>
    %26 = arith.addf %20, %25 : vector<8x64xf32>
    %27 = vector.extract_strided_slice %11 {offsets = [0, 2], sizes = [8, 1], strides = [1, 1]} : vector<8x3xf32> to vector<8x1xf32>
    %28 = vector.extract_strided_slice %12 {offsets = [2, 0], sizes = [1, 64], strides = [1, 1]} : vector<3x64xf32> to vector<1x64xf32>
    %29 = vector.broadcast %27 : vector<8x1xf32> to vector<8x64xf32>
    %30 = vector.broadcast %28 : vector<1x64xf32> to vector<8x64xf32>
    %31 = arith.mulf %29, %30 : vector<8x64xf32>
    %32 = arith.addf %26, %31 : vector<8x64xf32>
    %c0_9 = arith.constant 0 : index
    %c0_10 = arith.constant 0 : index
    %33 = vector.load %arg6[%c0_9, %c0_10] : memref<128x256xf32, #tpu.memory_space<vmem>>, vector<128x256xf32>
    %cst = arith.constant dense<0.000000e+00> : vector<8x256xf32>
    %34 = tpu.matmul %10, %33, %cst {dimension_numbers = #tpu.dot_dimension_numbers<[1], [0], [0], [1], [0, 0, 1, 1], [], []>} : vector<8x128xf32>, vector<128x256xf32>, vector<8x256xf32> -> vector<8x256xf32>
    %c0_11 = arith.constant 0 : index
    %c0_12 = arith.constant 0 : index
    %35 = vector.load %arg7[%c0_11, %c0_12] : memref<1x256xf32, #tpu.memory_space<vmem>>, vector<1x256xf32>
    %36 = vector.broadcast %35 : vector<1x256xf32> to vector<8x256xf32>
    %37 = arith.addf %34, %36 : vector<8x256xf32>
    %cst_13 = arith.constant dense<0.000000e+00> : vector<8xf32>
    %38 = vector.multi_reduction <add>, %32, %cst_13 [1] : vector<8x64xf32> to vector<8xf32>
    %39 = vector.shape_cast %38 : vector<8xf32> to vector<8x1xf32>
    %cst_14 = arith.constant 6.400000e+01 : f32
    %40 = vector.broadcast %cst_14 : f32 to vector<8x1xf32>
    %41 = arith.divf %39, %40 : vector<8x1xf32>
    %42 = arith.mulf %32, %32 : vector<8x64xf32>
    %cst_15 = arith.constant dense<0.000000e+00> : vector<8xf32>
    %43 = vector.multi_reduction <add>, %42, %cst_15 [1] : vector<8x64xf32> to vector<8xf32>
    %44 = vector.shape_cast %43 : vector<8xf32> to vector<8x1xf32>
    %cst_16 = arith.constant 6.400000e+01 : f32
    %45 = vector.broadcast %cst_16 : f32 to vector<8x1xf32>
    %46 = arith.divf %44, %45 : vector<8x1xf32>
    %47 = arith.mulf %41, %41 : vector<8x1xf32>
    %48 = arith.subf %46, %47 : vector<8x1xf32>
    %cst_17 = arith.constant 0.000000e+00 : f32
    %49 = vector.broadcast %cst_17 : f32 to vector<8x1xf32>
    %50 = arith.maximumf %48, %49 : vector<8x1xf32>
    %51 = vector.broadcast %41 : vector<8x1xf32> to vector<8x64xf32>
    %52 = arith.subf %32, %51 : vector<8x64xf32>
    %cst_18 = arith.constant 9.99999974E-6 : f32
    %53 = vector.broadcast %cst_18 : f32 to vector<8x1xf32>
    %54 = arith.addf %50, %53 : vector<8x1xf32>
    %55 = math.rsqrt %54 : vector<8x1xf32>
    %56 = vector.broadcast %55 : vector<8x1xf32> to vector<8x64xf32>
    %57 = arith.mulf %52, %56 : vector<8x64xf32>
    %58 = vector.extract_strided_slice %37 {offsets = [0, 0], sizes = [8, 64], strides = [1, 1]} : vector<8x256xf32> to vector<8x64xf32>
    %59 = vector.extract_strided_slice %37 {offsets = [0, 64], sizes = [8, 64], strides = [1, 1]} : vector<8x256xf32> to vector<8x64xf32>
    %60 = arith.mulf %57, %58 : vector<8x64xf32>
    %61 = arith.addf %60, %59 : vector<8x64xf32>
    %c0_19 = arith.constant 0 : index
    %c0_20 = arith.constant 0 : index
    %c0_21 = arith.constant 0 : index
    %62 = vector.load %arg8[%c0_19, %c0_20, %c0_21] : memref<2x64x64xf32, #tpu.memory_space<vmem>>, vector<1x64x64xf32>
    %63 = vector.shape_cast %62 : vector<1x64x64xf32> to vector<64x64xf32>
    %cst_22 = arith.constant dense<0.000000e+00> : vector<8x64xf32>
    %64 = tpu.matmul %61, %63, %cst_22 {dimension_numbers = #tpu.dot_dimension_numbers<[1], [0], [0], [1], [0, 0, 1, 1], [], []>} : vector<8x64xf32>, vector<64x64xf32>, vector<8x64xf32> -> vector<8x64xf32>
    %c0_23 = arith.constant 0 : index
    %c0_24 = arith.constant 0 : index
    %c0_25 = arith.constant 0 : index
    %65 = vector.load %arg9[%c0_23, %c0_24, %c0_25] : memref<2x1x64xf32, #tpu.memory_space<vmem>>, vector<1x1x64xf32>
    %66 = vector.shape_cast %65 : vector<1x1x64xf32> to vector<1x64xf32>
    %67 = vector.broadcast %66 : vector<1x64xf32> to vector<8x64xf32>
    %68 = arith.addf %64, %67 : vector<8x64xf32>
    %cst_26 = arith.constant 0.000000e+00 : f32
    %69 = vector.broadcast %cst_26 : f32 to vector<8x64xf32>
    %70 = arith.maximumf %68, %69 : vector<8x64xf32>
    %c0_27 = arith.constant 0 : index
    %c0_28 = arith.constant 0 : index
    %c0_29 = arith.constant 0 : index
    %71 = vector.load %arg10[%c0_27, %c0_28, %c0_29] : memref<2x64x64xf32, #tpu.memory_space<vmem>>, vector<1x64x64xf32>
    %72 = vector.shape_cast %71 : vector<1x64x64xf32> to vector<64x64xf32>
    %cst_30 = arith.constant dense<0.000000e+00> : vector<8x64xf32>
    %73 = tpu.matmul %70, %72, %cst_30 {dimension_numbers = #tpu.dot_dimension_numbers<[1], [0], [0], [1], [0, 0, 1, 1], [], []>} : vector<8x64xf32>, vector<64x64xf32>, vector<8x64xf32> -> vector<8x64xf32>
    %c0_31 = arith.constant 0 : index
    %c0_32 = arith.constant 0 : index
    %c0_33 = arith.constant 0 : index
    %74 = vector.load %arg11[%c0_31, %c0_32, %c0_33] : memref<2x1x64xf32, #tpu.memory_space<vmem>>, vector<1x1x64xf32>
    %75 = vector.shape_cast %74 : vector<1x1x64xf32> to vector<1x64xf32>
    %76 = vector.broadcast %75 : vector<1x64xf32> to vector<8x64xf32>
    %77 = arith.addf %73, %76 : vector<8x64xf32>
    %c0_34 = arith.constant 0 : index
    %c0_35 = arith.constant 0 : index
    %c0_36 = arith.constant 0 : index
    %78 = vector.load %arg12[%c0_34, %c0_35, %c0_36] : memref<2x1x64xf32, #tpu.memory_space<vmem>>, vector<1x1x64xf32>
    %79 = vector.shape_cast %78 : vector<1x1x64xf32> to vector<1x64xf32>
    %80 = vector.broadcast %79 : vector<1x64xf32> to vector<8x64xf32>
    %81 = arith.mulf %77, %80 : vector<8x64xf32>
    %82 = arith.addf %32, %81 : vector<8x64xf32>
    %cst_37 = arith.constant dense<0.000000e+00> : vector<8xf32>
    %83 = vector.multi_reduction <add>, %82, %cst_37 [1] : vector<8x64xf32> to vector<8xf32>
    %84 = vector.shape_cast %83 : vector<8xf32> to vector<8x1xf32>
    %cst_38 = arith.constant 6.400000e+01 : f32
    %85 = vector.broadcast %cst_38 : f32 to vector<8x1xf32>
    %86 = arith.divf %84, %85 : vector<8x1xf32>
    %87 = arith.mulf %82, %82 : vector<8x64xf32>
    %cst_39 = arith.constant dense<0.000000e+00> : vector<8xf32>
    %88 = vector.multi_reduction <add>, %87, %cst_39 [1] : vector<8x64xf32> to vector<8xf32>
    %89 = vector.shape_cast %88 : vector<8xf32> to vector<8x1xf32>
    %cst_40 = arith.constant 6.400000e+01 : f32
    %90 = vector.broadcast %cst_40 : f32 to vector<8x1xf32>
    %91 = arith.divf %89, %90 : vector<8x1xf32>
    %92 = arith.mulf %86, %86 : vector<8x1xf32>
    %93 = arith.subf %91, %92 : vector<8x1xf32>
    %cst_41 = arith.constant 0.000000e+00 : f32
    %94 = vector.broadcast %cst_41 : f32 to vector<8x1xf32>
    %95 = arith.maximumf %93, %94 : vector<8x1xf32>
    %96 = vector.broadcast %86 : vector<8x1xf32> to vector<8x64xf32>
    %97 = arith.subf %82, %96 : vector<8x64xf32>
    %cst_42 = arith.constant 9.99999974E-6 : f32
    %98 = vector.broadcast %cst_42 : f32 to vector<8x1xf32>
    %99 = arith.addf %95, %98 : vector<8x1xf32>
    %100 = math.rsqrt %99 : vector<8x1xf32>
    %101 = vector.broadcast %100 : vector<8x1xf32> to vector<8x64xf32>
    %102 = arith.mulf %97, %101 : vector<8x64xf32>
    %103 = vector.extract_strided_slice %37 {offsets = [0, 128], sizes = [8, 64], strides = [1, 1]} : vector<8x256xf32> to vector<8x64xf32>
    %104 = vector.extract_strided_slice %37 {offsets = [0, 192], sizes = [8, 64], strides = [1, 1]} : vector<8x256xf32> to vector<8x64xf32>
    %105 = arith.mulf %102, %103 : vector<8x64xf32>
    %106 = arith.addf %105, %104 : vector<8x64xf32>
    %c1 = arith.constant 1 : index
    %c0_43 = arith.constant 0 : index
    %c0_44 = arith.constant 0 : index
    %107 = vector.load %arg8[%c1, %c0_43, %c0_44] : memref<2x64x64xf32, #tpu.memory_space<vmem>>, vector<1x64x64xf32>
    %108 = vector.shape_cast %107 : vector<1x64x64xf32> to vector<64x64xf32>
    %cst_45 = arith.constant dense<0.000000e+00> : vector<8x64xf32>
    %109 = tpu.matmul %106, %108, %cst_45 {dimension_numbers = #tpu.dot_dimension_numbers<[1], [0], [0], [1], [0, 0, 1, 1], [], []>} : vector<8x64xf32>, vector<64x64xf32>, vector<8x64xf32> -> vector<8x64xf32>
    %c1_46 = arith.constant 1 : index
    %c0_47 = arith.constant 0 : index
    %c0_48 = arith.constant 0 : index
    %110 = vector.load %arg9[%c1_46, %c0_47, %c0_48] : memref<2x1x64xf32, #tpu.memory_space<vmem>>, vector<1x1x64xf32>
    %111 = vector.shape_cast %110 : vector<1x1x64xf32> to vector<1x64xf32>
    %112 = vector.broadcast %111 : vector<1x64xf32> to vector<8x64xf32>
    %113 = arith.addf %109, %112 : vector<8x64xf32>
    %cst_49 = arith.constant 0.000000e+00 : f32
    %114 = vector.broadcast %cst_49 : f32 to vector<8x64xf32>
    %115 = arith.maximumf %113, %114 : vector<8x64xf32>
    %c1_50 = arith.constant 1 : index
    %c0_51 = arith.constant 0 : index
    %c0_52 = arith.constant 0 : index
    %116 = vector.load %arg10[%c1_50, %c0_51, %c0_52] : memref<2x64x64xf32, #tpu.memory_space<vmem>>, vector<1x64x64xf32>
    %117 = vector.shape_cast %116 : vector<1x64x64xf32> to vector<64x64xf32>
    %cst_53 = arith.constant dense<0.000000e+00> : vector<8x64xf32>
    %118 = tpu.matmul %115, %117, %cst_53 {dimension_numbers = #tpu.dot_dimension_numbers<[1], [0], [0], [1], [0, 0, 1, 1], [], []>} : vector<8x64xf32>, vector<64x64xf32>, vector<8x64xf32> -> vector<8x64xf32>
    %c1_54 = arith.constant 1 : index
    %c0_55 = arith.constant 0 : index
    %c0_56 = arith.constant 0 : index
    %119 = vector.load %arg11[%c1_54, %c0_55, %c0_56] : memref<2x1x64xf32, #tpu.memory_space<vmem>>, vector<1x1x64xf32>
    %120 = vector.shape_cast %119 : vector<1x1x64xf32> to vector<1x64xf32>
    %121 = vector.broadcast %120 : vector<1x64xf32> to vector<8x64xf32>
    %122 = arith.addf %118, %121 : vector<8x64xf32>
    %c1_57 = arith.constant 1 : index
    %c0_58 = arith.constant 0 : index
    %c0_59 = arith.constant 0 : index
    %123 = vector.load %arg12[%c1_57, %c0_58, %c0_59] : memref<2x1x64xf32, #tpu.memory_space<vmem>>, vector<1x1x64xf32>
    %124 = vector.shape_cast %123 : vector<1x1x64xf32> to vector<1x64xf32>
    %125 = vector.broadcast %124 : vector<1x64xf32> to vector<8x64xf32>
    %126 = arith.mulf %122, %125 : vector<8x64xf32>
    %127 = arith.addf %82, %126 : vector<8x64xf32>
    %c0_60 = arith.constant 0 : index
    %c0_61 = arith.constant 0 : index
    %128 = vector.load %arg13[%c0_60, %c0_61] : memref<64x128xf32, #tpu.memory_space<vmem>>, vector<64x128xf32>
    %cst_62 = arith.constant dense<0.000000e+00> : vector<8x128xf32>
    %129 = tpu.matmul %127, %128, %cst_62 {dimension_numbers = #tpu.dot_dimension_numbers<[1], [0], [0], [1], [0, 0, 1, 1], [], []>} : vector<8x64xf32>, vector<64x128xf32>, vector<8x128xf32> -> vector<8x128xf32>
    %c0_63 = arith.constant 0 : index
    %c0_64 = arith.constant 0 : index
    %130 = vector.load %arg14[%c0_63, %c0_64] : memref<1x128xf32, #tpu.memory_space<vmem>>, vector<1x128xf32>
    %131 = vector.broadcast %130 : vector<1x128xf32> to vector<8x128xf32>
    %132 = arith.addf %129, %131 : vector<8x128xf32>
    %c0_65 = arith.constant 0 : index
    %c0_66 = arith.constant 0 : index
    %133 = vector.load %arg15[%c0_65, %c0_66] : memref<8x128xf32, #tpu.memory_space<vmem>>, vector<8x128xf32>
    tpu.vector_store %arg15[%c0_65, %c0_66], %132 {strides = array<i32>} : memref<8x128xf32, #tpu.memory_space<vmem>>, vector<8x128xf32>,
    return
  }
  func.func @transform_0(%arg0: i32) -> (i32, i32) {
    %c0_i32 = arith.constant 0 : i32
    %c0_i32_0 = arith.constant 0 : i32
    return %arg0, %c0_i32 : i32, i32
  }
  func.func @transform_1(%arg0: i32) -> (i32, i32) {
    %c0_i32 = arith.constant 0 : i32
    %c0_i32_0 = arith.constant 0 : i32
    return %arg0, %c0_i32 : i32, i32
  }
  func.func @transform_2(%arg0: i32) -> (i32, i32) {
    %c0_i32 = arith.constant 0 : i32
    %c0_i32_0 = arith.constant 0 : i32
    %c0_i32_1 = arith.constant 0 : i32
    return %c0_i32, %c0_i32_0 : i32, i32
  }
  func.func @transform_3(%arg0: i32) -> (i32, i32) {
    %c0_i32 = arith.constant 0 : i32
    %c0_i32_0 = arith.constant 0 : i32
    %c0_i32_1 = arith.constant 0 : i32
    return %c0_i32, %c0_i32_0 : i32, i32
  }
  func.func @transform_4(%arg0: i32) -> (i32, i32) {
    %c0_i32 = arith.constant 0 : i32
    %c0_i32_0 = arith.constant 0 : i32
    %c0_i32_1 = arith.constant 0 : i32
    return %c0_i32, %c0_i32_0 : i32, i32
  }
  func.func @transform_5(%arg0: i32) -> (i32, i32) {
    %c0_i32 = arith.constant 0 : i32
    %c0_i32_0 = arith.constant 0 : i32
    %c0_i32_1 = arith.constant 0 : i32
    return %c0_i32, %c0_i32_0 : i32, i32
  }
  func.func @transform_6(%arg0: i32) -> (i32, i32) {
    %c0_i32 = arith.constant 0 : i32
    %c0_i32_0 = arith.constant 0 : i32
    %c0_i32_1 = arith.constant 0 : i32
    return %c0_i32, %c0_i32_0 : i32, i32
  }
  func.func @transform_7(%arg0: i32) -> (i32, i32, i32) {
    %c0_i32 = arith.constant 0 : i32
    %c0_i32_0 = arith.constant 0 : i32
    %c0_i32_1 = arith.constant 0 : i32
    %c0_i32_2 = arith.constant 0 : i32
    return %c0_i32, %c0_i32_0, %c0_i32_1 : i32, i32, i32
  }
  func.func @transform_8(%arg0: i32) -> (i32, i32, i32) {
    %c0_i32 = arith.constant 0 : i32
    %c0_i32_0 = arith.constant 0 : i32
    %c0_i32_1 = arith.constant 0 : i32
    %c0_i32_2 = arith.constant 0 : i32
    return %c0_i32, %c0_i32_0, %c0_i32_1 : i32, i32, i32
  }
  func.func @transform_9(%arg0: i32) -> (i32, i32, i32) {
    %c0_i32 = arith.constant 0 : i32
    %c0_i32_0 = arith.constant 0 : i32
    %c0_i32_1 = arith.constant 0 : i32
    %c0_i32_2 = arith.constant 0 : i32
    return %c0_i32, %c0_i32_0, %c0_i32_1 : i32, i32, i32
  }
  func.func @transform_10(%arg0: i32) -> (i32, i32, i32) {
    %c0_i32 = arith.constant 0 : i32
    %c0_i32_0 = arith.constant 0 : i32
    %c0_i32_1 = arith.constant 0 : i32
    %c0_i32_2 = arith.constant 0 : i32
    return %c0_i32, %c0_i32_0, %c0_i32_1 : i32, i32, i32
  }
  func.func @transform_11(%arg0: i32) -> (i32, i32, i32) {
    %c0_i32 = arith.constant 0 : i32
    %c0_i32_0 = arith.constant 0 : i32
    %c0_i32_1 = arith.constant 0 : i32
    %c0_i32_2 = arith.constant 0 : i32
    return %c0_i32, %c0_i32_0, %c0_i32_1 : i32, i32, i32
  }
  func.func @transform_12(%arg0: i32) -> (i32, i32) {
    %c0_i32 = arith.constant 0 : i32
    %c0_i32_0 = arith.constant 0 : i32
    %c0_i32_1 = arith.constant 0 : i32
    return %c0_i32, %c0_i32_0 : i32, i32
  }
  func.func @transform_13(%arg0: i32) -> (i32, i32) {
    %c0_i32 = arith.constant 0 : i32
    %c0_i32_0 = arith.constant 0 : i32
    %c0_i32_1 = arith.constant 0 : i32
    return %c0_i32, %c0_i32_0 : i32, i32
  }
  func.func @transform_14(%arg0: i32) -> (i32, i32) {
    %c0_i32 = arith.constant 0 : i32
    %c0_i32_0 = arith.constant 0 : i32
    return %arg0, %c0_i32 : i32, i32
  }
}

</mosaic_0001>

<llo_original>
// kernel: tpu_custom_call.1
$region0: #{tpu_custom_call.1}
  #allocation0 [shape = 'u32[]', space=smem, size = 0x4, offset = 0x4, fixed_abs, tag = 'smem constant byte address 0x4 - core index']
  #allocation1 [shape = 'u32[144,128]{1,0:T(1,128)}', space=vmem, size = 0x12000, scoped, tag = 'internal scratch']
  %s0 = inlined_call_operand.vmem [shape: f32[8,3], index: 0, kind: input, shape index: {}]
  %s1 = inlined_call_operand.vmem [shape: f32[8,1], index: 1, kind: input, shape index: {}]
  %s2 = inlined_call_operand.hbm [shape: f32[1,128], index: 2, kind: input, shape index: {}]
  %s3 = inlined_call_operand.hbm [shape: f32[3,64], index: 3, kind: input, shape index: {}]
  %s4 = inlined_call_operand.hbm [shape: f32[1,64], index: 4, kind: input, shape index: {}]
  %s5 = inlined_call_operand.hbm [shape: f32[128,256], index: 5, kind: input, shape index: {}]
  %s6 = inlined_call_operand.vmem [shape: f32[1,256], index: 6, kind: input, shape index: {}]
  %s7 = inlined_call_operand.hbm [shape: f32[2,64,64], index: 7, kind: input, shape index: {}]
  %s8 = inlined_call_operand.hbm [shape: f32[2,1,64], index: 8, kind: input, shape index: {}]
  %s9 = inlined_call_operand.hbm [shape: f32[2,64,64], index: 9, kind: input, shape index: {}]
  %s10 = inlined_call_operand.hbm [shape: f32[2,1,64], index: 10, kind: input, shape index: {}]
  %s11 = inlined_call_operand.hbm [shape: f32[2,1,64], index: 11, kind: input, shape index: {}]
  %s12 = inlined_call_operand.vmem [shape: f32[64,128], index: 12, kind: input, shape index: {}]
  %s13 = inlined_call_operand.vmem [shape: f32[1,128], index: 13, kind: input, shape index: {}]
  %s14 = inlined_call_operand.hbm [shape: f32[8,128], index: 14, kind: output, shape index: {}]
  %s15 = sld [smem:[#allocation0]]
  $region102: #{tpu_custom_call.1} parent=0
    _
  %s17 = ssub.s32 1, %s15
  %s18 = scalar_select 0, %s17, %s15
  $region1: #{tpu_custom_call.1} parent=0
    #allocation2 [shape = 'u8[512]{0}', space=vmem, size = 0x400, scoped, tag = 'input window, operand 2, single buffered']
    #allocation3 [shape = 's32[1]{0}', space=sflag, size = 0x4, scoped, tag = 'scoped memory for tpu_custom_call.1']
    #allocation4 [shape = 's32[1]{0}', space=sflag, size = 0x4, scoped, tag = 'scoped memory for tpu_custom_call.1']
    #allocation5 [shape = 'u8[2048]{0}', space=vmem, size = 0x800, scoped, tag = 'input window, operand 3, single buffered']
    #allocation6 [shape = 's32[1]{0}', space=sflag, size = 0x4, scoped, tag = 'scoped memory for tpu_custom_call.1']
    #allocation7 [shape = 'u8[512]{0}', space=vmem, size = 0x400, scoped, tag = 'input window, operand 4, single buffered']
    #allocation8 [shape = 'u8[131072]{0}', space=vmem, size = 0x20000, scoped, tag = 'input window, operand 5, single buffered']
    #allocation9 [shape = 's32[1]{0}', space=sflag, size = 0x4, scoped, tag = 'scoped memory for tpu_custom_call.1']
    #allocation10 [shape = 'u8[65536]{0}', space=vmem, size = 0x10000, scoped, tag = 'input window, operand 7, single buffered']
    #allocation11 [shape = 'u8[1024]{0}', space=vmem, size = 0x400, scoped, tag = 'input window, operand 8, single buffered']
    #allocation12 [shape = 's32[1]{0}', space=sflag, size = 0x4, scoped, tag = 'scoped memory for tpu_custom_call.1']
    #allocation13 [shape = 'u8[65536]{0}', space=vmem, size = 0x10000, scoped, tag = 'input window, operand 9, single buffered']
    #allocation14 [shape = 'u8[1024]{0}', space=vmem, size = 0x400, scoped, tag = 'input window, operand 10, single buffered']
    #allocation15 [shape = 's32[1]{0}', space=sflag, size = 0x4, scoped, tag = 'scoped memory for tpu_custom_call.1']
    #allocation16 [shape = 'u8[1024]{0}', space=vmem, size = 0x400, scoped, tag = 'input window, operand 11, single buffered']
    #allocation17 [shape = 'u8[4096]{0}', space=vmem, size = 0x1000, scoped, tag = 'output window, operand 0, single buffered']
    %19 = vsyncpa [#allocation3], 0
    %20 = vsyncpa [#allocation6], 0
    %21 = vsyncpa [#allocation9], 0
    %22 = vsyncpa [#allocation12], 0
    %23 = vsyncpa [#allocation15], 0
    %24 = vsyncpa [#allocation4], 0
    // Predicated region
    $region2: #{tpu_custom_call.1} parent=1 // pred_check
      _
    $region3: #{tpu_custom_call.1} parent=1 // pred_check_branch
      %26 = sbr.rel (0) target = $region5
    $region4: #{tpu_custom_call.1} parent=1 // pred_region
      _
    $region5: #{tpu_custom_call.1} parent=1 // pred_fallthru
      _
    // Predicated region
    $region6: #{tpu_custom_call.1} parent=1 // pred_check
      _
    $region7: #{tpu_custom_call.1} parent=1 // pred_check_branch
      %28 = sbr.rel (0) target = $region9
    $region8: #{tpu_custom_call.1} parent=1 // pred_region
      _
    $region9: #{tpu_custom_call.1} parent=1 // pred_fallthru
      _
    // Predicated region
    $region10: #{tpu_custom_call.1} parent=1 // pred_check
      _
    $region11: #{tpu_custom_call.1} parent=1 // pred_check_branch
      %30 = sbr.rel (0) target = $region13
    $region12: #{tpu_custom_call.1} parent=1 // pred_region
      %s32 = ssub.s32 16, 16
      %33 = vsyncadd [#allocation3], %s32
      %s35 = sshll.u32 [#allocation2], 4
      %s36 = int_to_ptr.vmem [resolvable:$true] %s35
      %38 = dma.hbm_to_vmem [thread:$0]  %s2, 16, %s36, [#allocation3]
    $region13: #{tpu_custom_call.1} parent=1 // pred_fallthru
      _
    // Predicated region
    $region14: #{tpu_custom_call.1} parent=1 // pred_check
      _
    $region15: #{tpu_custom_call.1} parent=1 // pred_check_branch
      %40 = sbr.rel (0) target = $region17
    $region16: #{tpu_custom_call.1} parent=1 // pred_region
      %s42 = ssub.s32 64, 64
      %43 = vsyncadd [#allocation6], %s42
      %s45 = sshll.u32 [#allocation5], 4
      %s46 = int_to_ptr.vmem [resolvable:$true] %s45
      %48 = dma.hbm_to_vmem [thread:$0]  %s3, 64, %s46, [#allocation6]
    $region17: #{tpu_custom_call.1} parent=1 // pred_fallthru
      _
    // Predicated region
    $region18: #{tpu_custom_call.1} parent=1 // pred_check
      _
    $region19: #{tpu_custom_call.1} parent=1 // pred_check_branch
      %50 = sbr.rel (0) target = $region21
    $region20: #{tpu_custom_call.1} parent=1 // pred_region
      %s52 = ssub.s32 16, 16
      %53 = vsyncadd [#allocation6], %s52
      %s55 = sshll.u32 [#allocation7], 4
      %s56 = int_to_ptr.vmem [resolvable:$true] %s55
      %58 = dma.hbm_to_vmem [thread:$0]  %s4, 16, %s56, [#allocation6]
    $region21: #{tpu_custom_call.1} parent=1 // pred_fallthru
      _
    // Predicated region
    $region22: #{tpu_custom_call.1} parent=1 // pred_check
      _
    $region23: #{tpu_custom_call.1} parent=1 // pred_check_branch
      %60 = sbr.rel (0) target = $region25
    $region24: #{tpu_custom_call.1} parent=1 // pred_region
      %s62 = ssub.s32 4096, 4096
      %63 = vsyncadd [#allocation9], %s62
      %s64 = sshll.u32 [#allocation8], 4
      %s65 = int_to_ptr.vmem [resolvable:$true] %s64
      %70 = dma.hbm_to_vmem [thread:$0]  %s5, 4096, %s65, [#allocation9], 256, 256, 16
    $region25: #{tpu_custom_call.1} parent=1 // pred_fallthru
      _
    // Predicated region
    $region26: #{tpu_custom_call.1} parent=1 // pred_check
      _
    $region27: #{tpu_custom_call.1} parent=1 // pred_check_branch
      %72 = sbr.rel (0) target = $region29
    $region28: #{tpu_custom_call.1} parent=1 // pred_region
      _
    $region29: #{tpu_custom_call.1} parent=1 // pred_fallthru
      _
    // Predicated region
    $region30: #{tpu_custom_call.1} parent=1 // pred_check
      _
    $region31: #{tpu_custom_call.1} parent=1 // pred_check_branch
      %74 = sbr.rel (0) target = $region33
    $region32: #{tpu_custom_call.1} parent=1 // pred_region
      %s76 = ssub.s32 2048, 2048
      %77 = vsyncadd [#allocation9], %s76
      %s78 = sshll.u32 [#allocation10], 4
      %s79 = int_to_ptr.vmem [resolvable:$true] %s78
      %84 = dma.hbm_to_vmem [thread:$0]  %s7, 2048, %s79, [#allocation9], 128, 128, 8
    $region33: #{tpu_custom_call.1} parent=1 // pred_fallthru
      _
    // Predicated region
    $region34: #{tpu_custom_call.1} parent=1 // pred_check
      _
    $region35: #{tpu_custom_call.1} parent=1 // pred_check_branch
      %86 = sbr.rel (0) target = $region37
    $region36: #{tpu_custom_call.1} parent=1 // pred_region
      %s88 = ssub.s32 32, 32
      %89 = vsyncadd [#allocation12], %s88
      %s90 = sshll.u32 [#allocation11], 4
      %s91 = int_to_ptr.vmem [resolvable:$true] %s90
      %96 = dma.hbm_to_vmem [thread:$0]  %s8, 32, %s91, [#allocation12], 16, 16, 1
    $region37: #{tpu_custom_call.1} parent=1 // pred_fallthru
      _
    // Predicated region
    $region38: #{tpu_custom_call.1} parent=1 // pred_check
      _
    $region39: #{tpu_custom_call.1} parent=1 // pred_check_branch
      %98 = sbr.rel (0) target = $region41
    $region40: #{tpu_custom_call.1} parent=1 // pred_region
      %s100 = ssub.s32 2048, 2048
      %101 = vsyncadd [#allocation12], %s100
      %s102 = sshll.u32 [#allocation13], 4
      %s103 = int_to_ptr.vmem [resolvable:$true] %s102
      %108 = dma.hbm_to_vmem [thread:$0]  %s9, 2048, %s103, [#allocation12], 128, 128, 8
    $region41: #{tpu_custom_call.1} parent=1 // pred_fallthru
      _
    // Predicated region
    $region42: #{tpu_custom_call.1} parent=1 // pred_check
      _
    $region43: #{tpu_custom_call.1} parent=1 // pred_check_branch
      %110 = sbr.rel (0) target = $region45
    $region44: #{tpu_custom_call.1} parent=1 // pred_region
      %s112 = ssub.s32 32, 32
      %113 = vsyncadd [#allocation15], %s112
      %s114 = sshll.u32 [#allocation14], 4
      %s115 = int_to_ptr.vmem [resolvable:$true] %s114
      %120 = dma.hbm_to_vmem [thread:$0]  %s10, 32, %s115, [#allocation15], 16, 16, 1
    $region45: #{tpu_custom_call.1} parent=1 // pred_fallthru
      _
    // Predicated region
    $region46: #{tpu_custom_call.1} parent=1 // pred_check
      _
    $region47: #{tpu_custom_call.1} parent=1 // pred_check_branch
      %122 = sbr.rel (0) target = $region49
    $region48: #{tpu_custom_call.1} parent=1 // pred_region
      %s124 = ssub.s32 32, 32
      %125 = vsyncadd [#allocation15], %s124
      %s126 = sshll.u32 [#allocation16], 4
      %s127 = int_to_ptr.vmem [resolvable:$true] %s126
      %132 = dma.hbm_to_vmem [thread:$0]  %s11, 32, %s127, [#allocation15], 16, 16, 1
    $region49: #{tpu_custom_call.1} parent=1 // pred_fallthru
      _
    // Predicated region
    $region50: #{tpu_custom_call.1} parent=1 // pred_check
      _
    $region51: #{tpu_custom_call.1} parent=1 // pred_check_branch
      %134 = sbr.rel (0) target = $region53
    $region52: #{tpu_custom_call.1} parent=1 // pred_region
      _
    $region53: #{tpu_custom_call.1} parent=1 // pred_fallthru
      _
    // Predicated region
    $region54: #{tpu_custom_call.1} parent=1 // pred_check
      _
    $region55: #{tpu_custom_call.1} parent=1 // pred_check_branch
      %136 = sbr.rel (0) target = $region57
    $region56: #{tpu_custom_call.1} parent=1 // pred_region
      _
    $region57: #{tpu_custom_call.1} parent=1 // pred_fallthru
      _
    // Predicated region
    $region58: #{tpu_custom_call.1} parent=1 // pred_check
      _
    $region59: #{tpu_custom_call.1} parent=1 // pred_check_branch
      %138 = sbr.rel (0) target = $region61
    $region60: #{tpu_custom_call.1} parent=1 // pred_region
      %139 = dma.done [#allocation3], 16
    $region61: #{tpu_custom_call.1} parent=1 // pred_fallthru
      _
    // Predicated region
    $region62: #{tpu_custom_call.1} parent=1 // pred_check
      _
    $region63: #{tpu_custom_call.1} parent=1 // pred_check_branch
      %141 = sbr.rel (0) target = $region65
    $region64: #{tpu_custom_call.1} parent=1 // pred_region
      %142 = dma.done [#allocation6], 64
    $region65: #{tpu_custom_call.1} parent=1 // pred_fallthru
      _
    // Predicated region
    $region66: #{tpu_custom_call.1} parent=1 // pred_check
      _
    $region67: #{tpu_custom_call.1} parent=1 // pred_check_branch
      %144 = sbr.rel (0) target = $region69
    $region68: #{tpu_custom_call.1} parent=1 // pred_region
      %145 = dma.done [#allocation6], 16
    $region69: #{tpu_custom_call.1} parent=1 // pred_fallthru
      _
    // Predicated region
    $region70: #{tpu_custom_call.1} parent=1 // pred_check
      _
    $region71: #{tpu_custom_call.1} parent=1 // pred_check_branch
      %147 = sbr.rel (0) target = $region73
    $region72: #{tpu_custom_call.1} parent=1 // pred_region
      %148 = dma.done [#allocation9], 4096
    $region73: #{tpu_custom_call.1} parent=1 // pred_fallthru
      _
    // Predicated region
    $region74: #{tpu_custom_call.1} parent=1 // pred_check
      _
    $region75: #{tpu_custom_call.1} parent=1 // pred_check_branch
      %150 = sbr.rel (0) target = $region77
    $region76: #{tpu_custom_call.1} parent=1 // pred_region
      %151 = dma.done [#allocation9], 2048
    $region77: #{tpu_custom_call.1} parent=1 // pred_fallthru
      _
    // Predicated region
    $region78: #{tpu_custom_call.1} parent=1 // pred_check
      _
    $region79: #{tpu_custom_call.1} parent=1 // pred_check_branch
      %153 = sbr.rel (0) target = $region81
    $region80: #{tpu_custom_call.1} parent=1 // pred_region
      %154 = dma.done [#allocation12], 32
    $region81: #{tpu_custom_call.1} parent=1 // pred_fallthru
      _
    // Predicated region
    $region82: #{tpu_custom_call.1} parent=1 // pred_check
      _
    $region83: #{tpu_custom_call.1} parent=1 // pred_check_branch
      %156 = sbr.rel (0) target = $region85
    $region84: #{tpu_custom_call.1} parent=1 // pred_region
      %157 = dma.done [#allocation12], 2048
    $region85: #{tpu_custom_call.1} parent=1 // pred_fallthru
      _
    // Predicated region
    $region86: #{tpu_custom_call.1} parent=1 // pred_check
      _
    $region87: #{tpu_custom_call.1} parent=1 // pred_check_branch
      %159 = sbr.rel (0) target = $region89
    $region88: #{tpu_custom_call.1} parent=1 // pred_region
      %160 = dma.done [#allocation15], 32
    $region89: #{tpu_custom_call.1} parent=1 // pred_fallthru
      _
    // Predicated region
    $region90: #{tpu_custom_call.1} parent=1 // pred_check
      _
    $region91: #{tpu_custom_call.1} parent=1 // pred_check_branch
      %162 = sbr.rel (0) target = $region93
    $region92: #{tpu_custom_call.1} parent=1 // pred_region
      %163 = dma.done [#allocation15], 32
    $region93: #{tpu_custom_call.1} parent=1 // pred_fallthru
      _
    %v164 = vld [vmem:[%s1] sm:$0xff]
    %v165 = vld [vmem:[#allocation2] sm:$0x1]
    %167 = vset.pattern.permute.xlu0 0
    %168 = vperm.xlu0 %167, %v164
    %v169 = vpop.permute.xlu0 %168
    %v172 = vlaneseq
    %v173 = vshrl.u32 %v172, 7
    %v174 = vsub.s32 0, %v173
    %v175 = vrot.slane %v165, %v174
    %v177 = vmul.f32 %v169, %v175
    %v178 = vlaneseq
    %v179 = vand.u32 %v178, 127
    %vm180 = vcmp.lt.s32.totalorder %v179, 64
    %v181 = vand.u32 2147483647, %v177
    %vm182 = vcmp.le.f32.partialorder %v181, 0.7853982
    %vm183 = vcmp.lt.s32.totalorder %v177, 0
    %v184 = vand.u32 %v177, 2139095040
    %v185 = vshrl.u32 %v184, 23
    %v186 = vsub.s32 %v185, 127
    %v187 = vand.u32 2147483647, %v177
    %v188 = vand.u32 %v187, 8388607
    %v189 = vor.u32 %v188, 8388608
    %v190 = vsub.s32 0, %v189
    %v191 = vadd.s32 %v186, 1
    %vm192 = vcmp.gt.s32.totalorder %v191, 0
    %v193 = vsel %vm192, %v191, 0
    %v194 = vshrl.u32 %v193, 5
    %v195 = vand.u32 %v193, 31
    %v196 = vsub.s32 32, %v195
    %v197 = vshrl.u32 683565275, %v196
    %v198 = vshll.u32 683565275, %v195
    %v199 = vshrl.u32 2475754826, %v196
    %v200 = vor.u32 %v198, %v199
    %v201 = vshll.u32 2475754826, %v195
    %v202 = vshrl.u32 2131351028, %v196
    %v203 = vor.u32 %v201, %v202
    %v204 = vshll.u32 2131351028, %v195
    %v205 = vshrl.u32 2102212464, %v196
    %v206 = vor.u32 %v204, %v205
    %v207 = vshll.u32 2102212464, %v195
    %v208 = vshrl.u32 920167782, %v196
    %v209 = vor.u32 %v207, %v208
    %v210 = vshll.u32 920167782, %v195
    %v211 = vshrl.u32 1326507024, %v196
    %v212 = vor.u32 %v210, %v211
    %vm213 = vcmp.lt.s32.totalorder %v194, 1
    %vm214 = vcmp.lt.s32.totalorder %v194, 2
    %vm215 = vcmp.lt.s32.totalorder %v194, 3
    %vm216 = vcmp.lt.s32.totalorder %v194, 4
    %v217 = vsel %vm213, %v197, %v200
    %v218 = vsel %vm216, %v206, 2102212464
    %v219 = vsel %vm215, %v203, %v218
    %v220 = vsel %vm214, %v217, %v219
    %v221 = vsel %vm213, %v200, %v203
    %v222 = vsel %vm216, %v209, 920167782
    %v223 = vsel %vm215, %v206, %v222
    %v224 = vsel %vm214, %v221, %v223
    %v225 = vsel %vm213, %v203, %v206
    %v226 = vsel %vm216, %v212, 1326507024
    %v227 = vsel %vm215, %v209, %v226
    %v228 = vsel %vm214, %v225, %v227
    %v229 = vshll.u32 %v189, 8
    %v230 = vmul.u32.u64.compose %v229, %v228
    %v231 = vextract.low.u32 %v230
    %v232 = vextract.high.u32 %v230
    %v233 = vmul.u32.u64.compose %v229, %v224
    %v234 = vextract.low.u32 %v233
    %v235 = vextract.high.u32 %v233
    %v236 = vmul.u32 %v229, %v220
    %v237 = vadd.s32 %v232, %v234
    %vm238 = vc.u32 %v232, %v234
    %v239 = vadd.s32 %v235, 1
    %v240 = vsel %vm238, %v239, %v235
    %v241 = vadd.s32 %v236, %v240
    %v242 = vadd.s32 %v241, 536870912
    %v243 = vshrl.u32 %v242, 30
    %v244 = vshll.u32 %v243, 30
    %v245 = vsub.s32 %v241, %v244
    %vm246 = vcmp.lt.s32.totalorder %v245, 0
    %v247 = vsub.s32 0, %v245
    %v248 = vsel %vm246, %v247, %v245
    %v249 = vclz %v248
    %v250 = vsub.s32 %v249, 2
    %vm251 = vcmp.gt.s32.totalorder 0, %v250
    %v252 = vsel %vm251, 0, %v250
    %v253 = vsub.s32 32, %v252
    %v254 = vshll.u32 %v245, %v252
    %v255 = vshrl.u32 %v237, %v253
    %v256 = vor.u32 %v254, %v255
    %v257 = vsub.s32 4294967266, %v252
    %v258 = vadd.s32 %v257, 127
    %v259 = vshll.u32 %v258, 23
    %v260 = vor.u32 4788187, %v259
    %v261 = vand.u32 2147483647, %v260
    %v263 = vcvt.s32.f32 %v256
    %v264 = vmul.f32 %v263, %v261
    %v265 = vxor.u32 %v264, 2147483648
    %v266 = vsel %vm183, %v265, %v264
    %v267 = vsub.s32 4, %v243
    %v268 = vsel %vm183, %v267, %v243
    %v269 = vsel %vm182, %v177, %v266
    %v270 = vsel %vm182, 0, %v268
    %v271 = vcosq.f32.pop %v269
    %v272 = vsinq.f32.pop %v269
    %vm273 = vweird.f32 %v177
    %v274 = vadd.s32 %v270, 3
    %v275 = vand.u32 %v274, 3
    %vm276 = vcmp.lt.s32.totalorder %v275, 2
    %vm277 = vcmp.eq.s32.totalorder %v275, 0
    %v278 = vxor.u32 %v272, 2147483648
    %v279 = vsel %vm277, %v271, %v278
    %vm280 = vcmp.eq.s32.totalorder %v275, 2
    %v281 = vxor.u32 %v271, 2147483648
    %v282 = vsel %vm280, %v281, %v272
    %v283 = vsel %vm276, %v279, %v282
    %v284 = vsel %vm273, nan, %v283
    %v285 = vand.u32 2147483647, %v177
    %vm286 = vcmp.le.f32.partialorder %v285, 0.7853982
    %vm287 = vcmp.lt.s32.totalorder %v177, 0
    %v288 = vand.u32 %v177, 2139095040
    %v289 = vshrl.u32 %v288, 23
    %v290 = vsub.s32 %v289, 127
    %v291 = vand.u32 2147483647, %v177
    %v292 = vand.u32 %v291, 8388607
    %v293 = vor.u32 %v292, 8388608
    %v294 = vsub.s32 0, %v293
    %v295 = vadd.s32 %v290, 1
    %vm296 = vcmp.gt.s32.totalorder %v295, 0
    %v297 = vsel %vm296, %v295, 0
    %v298 = vshrl.u32 %v297, 5
    %v299 = vand.u32 %v297, 31
    %v300 = vsub.s32 32, %v299
    %v301 = vshrl.u32 683565275, %v300
    %v302 = vshll.u32 683565275, %v299
    %v303 = vshrl.u32 2475754826, %v300
    %v304 = vor.u32 %v302, %v303
    %v305 = vshll.u32 2475754826, %v299
    %v306 = vshrl.u32 2131351028, %v300
    %v307 = vor.u32 %v305, %v306
    %v308 = vshll.u32 2131351028, %v299
    %v309 = vshrl.u32 2102212464, %v300
    %v310 = vor.u32 %v308, %v309
    %v311 = vshll.u32 2102212464, %v299
    %v312 = vshrl.u32 920167782, %v300
    %v313 = vor.u32 %v311, %v312
    %v314 = vshll.u32 920167782, %v299
    %v315 = vshrl.u32 1326507024, %v300
    %v316 = vor.u32 %v314, %v315
    %vm317 = vcmp.lt.s32.totalorder %v298, 1
    %vm318 = vcmp.lt.s32.totalorder %v298, 2
    %vm319 = vcmp.lt.s32.totalorder %v298, 3
    %vm320 = vcmp.lt.s32.totalorder %v298, 4
    %v321 = vsel %vm317, %v301, %v304
    %v322 = vsel %vm320, %v310, 2102212464
    %v323 = vsel %vm319, %v307, %v322
    %v324 = vsel %vm318, %v321, %v323
    %v325 = vsel %vm317, %v304, %v307
    %v326 = vsel %vm320, %v313, 920167782
    %v327 = vsel %vm319, %v310, %v326
    %v328 = vsel %vm318, %v325, %v327
    %v329 = vsel %vm317, %v307, %v310
    %v330 = vsel %vm320, %v316, 1326507024
    %v331 = vsel %vm319, %v313, %v330
    %v332 = vsel %vm318, %v329, %v331
    %v333 = vshll.u32 %v293, 8
    %v334 = vmul.u32.u64.compose %v333, %v332
    %v335 = vextract.low.u32 %v334
    %v336 = vextract.high.u32 %v334
    %v337 = vmul.u32.u64.compose %v333, %v328
    %v338 = vextract.low.u32 %v337
    %v339 = vextract.high.u32 %v337
    %v340 = vmul.u32 %v333, %v324
    %v341 = vadd.s32 %v336, %v338
    %vm342 = vc.u32 %v336, %v338
    %v343 = vadd.s32 %v339, 1
    %v344 = vsel %vm342, %v343, %v339
    %v345 = vadd.s32 %v340, %v344
    %v346 = vadd.s32 %v345, 536870912
    %v347 = vshrl.u32 %v346, 30
    %v348 = vshll.u32 %v347, 30
    %v349 = vsub.s32 %v345, %v348
    %vm350 = vcmp.lt.s32.totalorder %v349, 0
    %v351 = vsub.s32 0, %v349
    %v352 = vsel %vm350, %v351, %v349
    %v353 = vclz %v352
    %v354 = vsub.s32 %v353, 2
    %vm355 = vcmp.gt.s32.totalorder 0, %v354
    %v356 = vsel %vm355, 0, %v354
    %v357 = vsub.s32 32, %v356
    %v358 = vshll.u32 %v349, %v356
    %v359 = vshrl.u32 %v341, %v357
    %v360 = vor.u32 %v358, %v359
    %v361 = vsub.s32 4294967266, %v356
    %v362 = vadd.s32 %v361, 127
    %v363 = vshll.u32 %v362, 23
    %v364 = vor.u32 4788187, %v363
    %v365 = vand.u32 2147483647, %v364
    %v367 = vcvt.s32.f32 %v360
    %v368 = vmul.f32 %v367, %v365
    %v369 = vxor.u32 %v368, 2147483648
    %v370 = vsel %vm287, %v369, %v368
    %v371 = vsub.s32 4, %v347
    %v372 = vsel %vm287, %v371, %v347
    %v373 = vsel %vm286, %v177, %v370
    %v374 = vsel %vm286, 0, %v372
    %v375 = vcosq.f32.pop %v373
    %v376 = vsinq.f32.pop %v373
    %vm377 = vweird.f32 %v177
    %v378 = vand.u32 %v374, 3
    %vm379 = vcmp.lt.s32.totalorder %v378, 2
    %vm380 = vcmp.eq.s32.totalorder %v378, 0
    %v381 = vxor.u32 %v376, 2147483648
    %v382 = vsel %vm380, %v375, %v381
    %vm383 = vcmp.eq.s32.totalorder %v378, 2
    %v384 = vxor.u32 %v375, 2147483648
    %v385 = vsel %vm383, %v384, %v376
    %v386 = vsel %vm379, %v382, %v385
    %v387 = vsel %vm377, nan, %v386
    %v388 = vsel %vm180, %v284, %v387
    %v389 = vld [vmem:[%s0] sm:$0xff]
    %v390 = vld [vmem:[#allocation5] sm:$0x7]
    %v391 = vld [vmem:[#allocation7] sm:$0x1]
    %393 = vset.pattern.permute.xlu0 0
    %394 = vperm.xlu0 %393, %v389
    %v395 = vpop.permute.xlu0 %394
    %v397 = vlaneseq
    %v398 = vshrl.u32 %v397, 7
    %v399 = vsub.s32 0, %v398
    %v400 = vrot.slane %v390, %v399
    %v401 = vmul.f32 %v395, %v400
    %v403 = vlaneseq
    %v404 = vshrl.u32 %v403, 7
    %v405 = vsub.s32 0, %v404
    %v406 = vrot.slane %v391, %v405
    %v408 = vadd.f32 %v406, %v401
    %409 = vset.pattern.permute.xlu0 1
    %410 = vperm.xlu0 %409, %v389
    %v411 = vpop.permute.xlu0 %410
    %v413 = vlaneseq
    %v414 = vshrl.u32 %v413, 7
    %v415 = vsub.s32 1, %v414
    %v416 = vrot.slane %v390, %v415
    %v417 = vmul.f32 %v411, %v416
    %v418 = vadd.f32 %v408, %v417
    %419 = vset.pattern.permute.xlu0 2
    %420 = vperm.xlu0 %419, %v389
    %v421 = vpop.permute.xlu0 %420
    %v423 = vlaneseq
    %v424 = vshrl.u32 %v423, 7
    %v425 = vsub.s32 2, %v424
    %v426 = vrot.slane %v390, %v425
    %v427 = vmul.f32 %v421, %v426
    %v428 = vadd.f32 %v418, %v427
    %v429 = vld [vmem:[#allocation8] sm:$0xff]
    %v430 = vld [vmem:[#allocation8 + $0x8] sm:$0xff]
    %v431 = vld [vmem:[#allocation8 + $0x10] sm:$0xff]
    %v432 = vld [vmem:[#allocation8 + $0x18] sm:$0xff]
    %v433 = vld [vmem:[#allocation8 + $0x20] sm:$0xff]
    %v434 = vld [vmem:[#allocation8 + $0x28] sm:$0xff]
    %v435 = vld [vmem:[#allocation8 + $0x30] sm:$0xff]
    %v436 = vld [vmem:[#allocation8 + $0x38] sm:$0xff]
    %v437 = vld [vmem:[#allocation8 + $0x40] sm:$0xff]
    %v438 = vld [vmem:[#allocation8 + $0x48] sm:$0xff]
    %v439 = vld [vmem:[#allocation8 + $0x50] sm:$0xff]
    %v440 = vld [vmem:[#allocation8 + $0x58] sm:$0xff]
    %v441 = vld [vmem:[#allocation8 + $0x60] sm:$0xff]
    %v442 = vld [vmem:[#allocation8 + $0x68] sm:$0xff]
    %v443 = vld [vmem:[#allocation8 + $0x70] sm:$0xff]
    %v444 = vld [vmem:[#allocation8 + $0x78] sm:$0xff]
    %v445 = vld [vmem:[#allocation8 + $0x80] sm:$0xff]
    %v446 = vld [vmem:[#allocation8 + $0x88] sm:$0xff]
    %v447 = vld [vmem:[#allocation8 + $0x90] sm:$0xff]
    %v448 = vld [vmem:[#allocation8 + $0x98] sm:$0xff]
    %v449 = vld [vmem:[#allocation8 + $0xa0] sm:$0xff]
    %v450 = vld [vmem:[#allocation8 + $0xa8] sm:$0xff]
    %v451 = vld [vmem:[#allocation8 + $0xb0] sm:$0xff]
    %v452 = vld [vmem:[#allocation8 + $0xb8] sm:$0xff]
    %v453 = vld [vmem:[#allocation8 + $0xc0] sm:$0xff]
    %v454 = vld [vmem:[#allocation8 + $0xc8] sm:$0xff]
    %v455 = vld [vmem:[#allocation8 + $0xd0] sm:$0xff]
    %v456 = vld [vmem:[#allocation8 + $0xd8] sm:$0xff]
    %v457 = vld [vmem:[#allocation8 + $0xe0] sm:$0xff]
    %v458 = vld [vmem:[#allocation8 + $0xe8] sm:$0xff]
    %v459 = vld [vmem:[#allocation8 + $0xf0] sm:$0xff]
    %v460 = vld [vmem:[#allocation8 + $0xf8] sm:$0xff]
    %v461 = vld [vmem:[%s6] sm:$0x3]
    %v463 = vlaneseq
    %v464 = vshrl.u32 %v463, 7
    %v465 = vsub.s32 0, %v464
    %v466 = vrot.slane %v461, %v465
    %v467 = vlaneseq
    %v468 = vshrl.u32 %v467, 7
    %v469 = vsub.s32 1, %v468
    %v470 = vrot.slane %v461, %v469
    %473 = vmatprep.subr.mxu0 %v430
    %474 = vmatpush1.msra.mxu0 %v429
    %475 = vmatprep.subr.mxu0 %v432
    %476 = vmatpush1.msra.mxu0 %v431
    %477 = vmatprep.subr.mxu0 %v434
    %478 = vmatpush1.msra.mxu0 %v433
    %479 = vmatprep.subr.mxu0 %v436
    %480 = vmatpush1.msra.mxu0 %v435
    %481 = vmatprep.subr.mxu0 %v438
    %482 = vmatpush1.msra.mxu0 %v437
    %483 = vmatprep.subr.mxu0 %v440
    %484 = vmatpush1.msra.mxu0 %v439
    %485 = vmatprep.subr.mxu0 %v442
    %486 = vmatpush1.msra.mxu0 %v441
    %487 = vmatprep.subr.mxu0 %v444
    %488 = vmatpush1.msra.mxu0 %v443
    %489 = vmatprep.subr.mxu0 %v446
    %490 = vmatpush1.msra.mxu0 %v445
    %491 = vmatprep.subr.mxu0 %v448
    %492 = vmatpush1.msra.mxu0 %v447
    %493 = vmatprep.subr.mxu0 %v450
    %494 = vmatpush1.msra.mxu0 %v449
    %495 = vmatprep.subr.mxu0 %v452
    %496 = vmatpush1.msra.mxu0 %v451
    %497 = vmatprep.subr.mxu0 %v454
    %498 = vmatpush1.msra.mxu0 %v453
    %499 = vmatprep.subr.mxu0 %v456
    %500 = vmatpush1.msra.mxu0 %v455
    %501 = vmatprep.subr.mxu0 %v458
    %502 = vmatpush1.msra.mxu0 %v457
    %503 = vmatprep.subr.mxu0 %v460
    %504 = vmatpush1.msra.mxu0 %v459
    %505 = vmatprep.subr.mxu0 0.0
    %506 = vmatpush1.msra.mxu0 0.0
    %507 = vmatprep.subr.mxu0 0.0
    %508 = vmatpush1.msra.mxu0 0.0
    %509 = vmatprep.subr.mxu0 0.0
    %510 = vmatpush1.msra.mxu0 0.0
    %511 = vmatprep.subr.mxu0 0.0
    %512 = vmatpush1.msra.mxu0 0.0
    %513 = vmatprep.subr.mxu0 0.0
    %514 = vmatpush1.msra.mxu0 0.0
    %515 = vmatprep.subr.mxu0 0.0
    %516 = vmatpush1.msra.mxu0 0.0
    %517 = vmatprep.subr.mxu0 0.0
    %518 = vmatpush1.msra.mxu0 0.0
    %519 = vmatprep.subr.mxu0 0.0
    %520 = vmatpush1.msra.mxu0 0.0
    %521 = vmatprep.subr.mxu0 0.0
    %522 = vmatpush1.msra.mxu0 0.0
    %523 = vmatprep.subr.mxu0 0.0
    %524 = vmatpush1.msra.mxu0 0.0
    %525 = vmatprep.subr.mxu0 0.0
    %526 = vmatpush1.msra.mxu0 0.0
    %527 = vmatprep.subr.mxu0 0.0
    %528 = vmatpush1.msra.mxu0 0.0
    %529 = vmatprep.subr.mxu0 0.0
    %530 = vmatpush1.msra.mxu0 0.0
    %531 = vmatprep.subr.mxu0 0.0
    %532 = vmatpush1.msra.mxu0 0.0
    %533 = vmatprep.subr.mxu0 0.0
    %534 = vmatpush1.msra.mxu0 0.0
    %535 = vmatprep.subr.mxu0 0.0
    %536 = vmatpush1.msra.mxu0 0.0
    %537 = vmatprep.mubr.f32.mxu0 0.0
    %538 = vmatmul.mubr.f32.gmra.mrb[0].mxu0 %v388
    %v539 = vpop.f32.mrb[0].mxu0
    %v540 = vadd.f32 %v466, %v539
    %v541 = vpop.f32.mrb[0].mxu0
    %v542 = vadd.f32 %v470, %v541
    %543 = vdwg.mxu0
    %vm544 = vcmask 523264
    %v545 = vsel %vm544, %v428, 0.0
    %546 = vadd.xlane.f32.xlu0 %v545
    %v547 = vpop.xlane.xlu0 %546
    %v548 = vrcp.pop 64.0
    %v549 = vmul.f32 %v547, %v548
    %v550 = vmul.f32 %v428, %v428
    %v551 = vsel %vm544, %v550, 0.0
    %552 = vadd.xlane.f32.xlu0 %v551
    %v553 = vpop.xlane.xlu0 %552
    %v554 = vmul.f32 %v553, %v548
    %v555 = vmul.f32 %v549, %v549
    %v556 = vsub.f32 %v554, %v555
    %v557 = vmax.f32 %v556, 0.0
    %v558 = vsub.f32 %v428, %v549
    %v559 = vadd.f32 %v557, 1e-05
    %v560 = vrsqrt.pop %v559
    %v561 = vmul.f32 %v558, %v560
    %v562 = vmul.f32 %v561, %v540
    %564 = vrot.lane.b32.xlu0 %v540, 64
    %v565 = vpop.permute.xlu0 %564
    %v567 = vadd.f32 %v562, %v565
    %v568 = vld [vmem:[#allocation10] sm:$0xff]
    %v569 = vld [vmem:[#allocation10 + $0x8] sm:$0xff]
    %v570 = vld [vmem:[#allocation10 + $0x10] sm:$0xff]
    %v571 = vld [vmem:[#allocation10 + $0x18] sm:$0xff]
    %v572 = vld [vmem:[#allocation10 + $0x20] sm:$0xff]
    %v573 = vld [vmem:[#allocation10 + $0x28] sm:$0xff]
    %v574 = vld [vmem:[#allocation10 + $0x30] sm:$0xff]
    %v575 = vld [vmem:[#allocation10 + $0x38] sm:$0xff]
    %v576 = vld [vmem:[#allocation11] sm:$0x1]
    %v578 = vlaneseq
    %v579 = vshrl.u32 %v578, 7
    %v580 = vsub.s32 0, %v579
    %v581 = vrot.slane %v576, %v580
    %v584 = vsel %vm544, %v567, 0
    %586 = vmatprep.subr.mxu0 0.0
    %587 = vmatpush1.msra.mxu0 %v568
    %588 = vmatprep.subr.mxu0 0.0
    %589 = vmatpush1.msra.mxu0 %v569
    %590 = vmatprep.subr.mxu0 0.0
    %591 = vmatpush1.msra.mxu0 %v570
    %592 = vmatprep.subr.mxu0 0.0
    %593 = vmatpush1.msra.mxu0 %v571
    %594 = vmatprep.subr.mxu0 0.0
    %595 = vmatpush1.msra.mxu0 %v572
    %596 = vmatprep.subr.mxu0 0.0
    %597 = vmatpush1.msra.mxu0 %v573
    %598 = vmatprep.subr.mxu0 0.0
    %599 = vmatpush1.msra.mxu0 %v574
    %600 = vmatprep.subr.mxu0 0.0
    %601 = vmatpush1.msra.mxu0 %v575
    %602 = vmatprep.subr.mxu0 0.0
    %603 = vmatpush1.msra.mxu0 0.0
    %604 = vmatprep.subr.mxu0 0.0
    %605 = vmatpush1.msra.mxu0 0.0
    %606 = vmatprep.subr.mxu0 0.0
    %607 = vmatpush1.msra.mxu0 0.0
    %608 = vmatprep.subr.mxu0 0.0
    %609 = vmatpush1.msra.mxu0 0.0
    %610 = vmatprep.subr.mxu0 0.0
    %611 = vmatpush1.msra.mxu0 0.0
    %612 = vmatprep.subr.mxu0 0.0
    %613 = vmatpush1.msra.mxu0 0.0
    %614 = vmatprep.subr.mxu0 0.0
    %615 = vmatpush1.msra.mxu0 0.0
    %616 = vmatprep.subr.mxu0 0.0
    %617 = vmatpush1.msra.mxu0 0.0
    %618 = vmatprep.subr.mxu0 0.0
    %619 = vmatpush1.msra.mxu0 0.0
    %620 = vmatprep.subr.mxu0 0.0
    %621 = vmatpush1.msra.mxu0 0.0
    %622 = vmatprep.subr.mxu0 0.0
    %623 = vmatpush1.msra.mxu0 0.0
    %624 = vmatprep.subr.mxu0 0.0
    %625 = vmatpush1.msra.mxu0 0.0
    %626 = vmatprep.subr.mxu0 0.0
    %627 = vmatpush1.msra.mxu0 0.0
    %628 = vmatprep.subr.mxu0 0.0
    %629 = vmatpush1.msra.mxu0 0.0
    %630 = vmatprep.subr.mxu0 0.0
    %631 = vmatpush1.msra.mxu0 0.0
    %632 = vmatprep.subr.mxu0 0.0
    %633 = vmatpush1.msra.mxu0 0.0
    %634 = vmatprep.subr.mxu0 0.0
    %635 = vmatpush1.msra.mxu0 0.0
    %636 = vmatprep.subr.mxu0 0.0
    %637 = vmatpush1.msra.mxu0 0.0
    %638 = vmatprep.subr.mxu0 0.0
    %639 = vmatpush1.msra.mxu0 0.0
    %640 = vmatprep.subr.mxu0 0.0
    %641 = vmatpush1.msra.mxu0 0.0
    %642 = vmatprep.subr.mxu0 0.0
    %643 = vmatpush1.msra.mxu0 0.0
    %644 = vmatprep.subr.mxu0 0.0
    %645 = vmatpush1.msra.mxu0 0.0
    %646 = vmatprep.subr.mxu0 0.0
    %647 = vmatpush1.msra.mxu0 0.0
    %648 = vmatprep.subr.mxu0 0.0
    %649 = vmatpush1.msra.mxu0 0.0
    %650 = vmatprep.mubr.f32.mxu0 0.0
    %651 = vmatmul.mubr.f32.gmra.mrb[0].mxu0 %v584
    %v652 = vpop.f32.mrb[0].mxu0
    %v653 = vadd.f32 %v581, %v652
    %v654 = vpop.f32.mrb[0].mxu0
    %655 = vdwg.mxu0
    %v656 = vmax.f32 %v653, 0.0
    %v657 = vld [vmem:[#allocation13] sm:$0xff]
    %v658 = vld [vmem:[#allocation13 + $0x8] sm:$0xff]
    %v659 = vld [vmem:[#allocation13 + $0x10] sm:$0xff]
    %v660 = vld [vmem:[#allocation13 + $0x18] sm:$0xff]
    %v661 = vld [vmem:[#allocation13 + $0x20] sm:$0xff]
    %v662 = vld [vmem:[#allocation13 + $0x28] sm:$0xff]
    %v663 = vld [vmem:[#allocation13 + $0x30] sm:$0xff]
    %v664 = vld [vmem:[#allocation13 + $0x38] sm:$0xff]
    %v665 = vld [vmem:[#allocation14] sm:$0x1]
    %v667 = vlaneseq
    %v668 = vshrl.u32 %v667, 7
    %v669 = vsub.s32 0, %v668
    %v670 = vrot.slane %v665, %v669
    %v673 = vsel %vm544, %v656, 0
    %675 = vmatprep.subr.mxu0 0.0
    %676 = vmatpush1.msra.mxu0 %v657
    %677 = vmatprep.subr.mxu0 0.0
    %678 = vmatpush1.msra.mxu0 %v658
    %679 = vmatprep.subr.mxu0 0.0
    %680 = vmatpush1.msra.mxu0 %v659
    %681 = vmatprep.subr.mxu0 0.0
    %682 = vmatpush1.msra.mxu0 %v660
    %683 = vmatprep.subr.mxu0 0.0
    %684 = vmatpush1.msra.mxu0 %v661
    %685 = vmatprep.subr.mxu0 0.0
    %686 = vmatpush1.msra.mxu0 %v662
    %687 = vmatprep.subr.mxu0 0.0
    %688 = vmatpush1.msra.mxu0 %v663
    %689 = vmatprep.subr.mxu0 0.0
    %690 = vmatpush1.msra.mxu0 %v664
    %691 = vmatprep.subr.mxu0 0.0
    %692 = vmatpush1.msra.mxu0 0.0
    %693 = vmatprep.subr.mxu0 0.0
    %694 = vmatpush1.msra.mxu0 0.0
    %695 = vmatprep.subr.mxu0 0.0
    %696 = vmatpush1.msra.mxu0 0.0
    %697 = vmatprep.subr.mxu0 0.0
    %698 = vmatpush1.msra.mxu0 0.0
    %699 = vmatprep.subr.mxu0 0.0
    %700 = vmatpush1.msra.mxu0 0.0
    %701 = vmatprep.subr.mxu0 0.0
    %702 = vmatpush1.msra.mxu0 0.0
    %703 = vmatprep.subr.mxu0 0.0
    %704 = vmatpush1.msra.mxu0 0.0
    %705 = vmatprep.subr.mxu0 0.0
    %706 = vmatpush1.msra.mxu0 0.0
    %707 = vmatprep.subr.mxu0 0.0
    %708 = vmatpush1.msra.mxu0 0.0
    %709 = vmatprep.subr.mxu0 0.0
    %710 = vmatpush1.msra.mxu0 0.0
    %711 = vmatprep.subr.mxu0 0.0
    %712 = vmatpush1.msra.mxu0 0.0
    %713 = vmatprep.subr.mxu0 0.0
    %714 = vmatpush1.msra.mxu0 0.0
    %715 = vmatprep.subr.mxu0 0.0
    %716 = vmatpush1.msra.mxu0 0.0
    %717 = vmatprep.subr.mxu0 0.0
    %718 = vmatpush1.msra.mxu0 0.0
    %719 = vmatprep.subr.mxu0 0.0
    %720 = vmatpush1.msra.mxu0 0.0
    %721 = vmatprep.subr.mxu0 0.0
    %722 = vmatpush1.msra.mxu0 0.0
    %723 = vmatprep.subr.mxu0 0.0
    %724 = vmatpush1.msra.mxu0 0.0
    %725 = vmatprep.subr.mxu0 0.0
    %726 = vmatpush1.msra.mxu0 0.0
    %727 = vmatprep.subr.mxu0 0.0
    %728 = vmatpush1.msra.mxu0 0.0
    %729 = vmatprep.subr.mxu0 0.0
    %730 = vmatpush1.msra.mxu0 0.0
    %731 = vmatprep.subr.mxu0 0.0
    %732 = vmatpush1.msra.mxu0 0.0
    %733 = vmatprep.subr.mxu0 0.0
    %734 = vmatpush1.msra.mxu0 0.0
    %735 = vmatprep.subr.mxu0 0.0
    %736 = vmatpush1.msra.mxu0 0.0
    %737 = vmatprep.subr.mxu0 0.0
    %738 = vmatpush1.msra.mxu0 0.0
    %739 = vmatprep.mubr.f32.mxu0 0.0
    %740 = vmatmul.mubr.f32.gmra.mrb[0].mxu0 %v673
    %v741 = vpop.f32.mrb[0].mxu0
    %v742 = vadd.f32 %v670, %v741
    %v743 = vpop.f32.mrb[0].mxu0
    %744 = vdwg.mxu0
    %v745 = vld [vmem:[#allocation16] sm:$0x1]
    %v747 = vlaneseq
    %v748 = vshrl.u32 %v747, 7
    %v749 = vsub.s32 0, %v748
    %v750 = vrot.slane %v745, %v749
    %v752 = vmul.f32 %v742, %v750
    %v753 = vadd.f32 %v428, %v752
    %v754 = vsel %vm544, %v753, 0.0
    %755 = vadd.xlane.f32.xlu0 %v754
    %v756 = vpop.xlane.xlu0 %755
    %v757 = vmul.f32 %v756, %v548
    %v758 = vmul.f32 %v753, %v753
    %v759 = vsel %vm544, %v758, 0.0
    %760 = vadd.xlane.f32.xlu0 %v759
    %v761 = vpop.xlane.xlu0 %760
    %v762 = vmul.f32 %v761, %v548
    %v763 = vmul.f32 %v757, %v757
    %v764 = vsub.f32 %v762, %v763
    %v765 = vmax.f32 %v764, 0.0
    %v766 = vsub.f32 %v753, %v757
    %v767 = vadd.f32 %v765, 1e-05
    %v768 = vrsqrt.pop %v767
    %v769 = vmul.f32 %v766, %v768
    %v770 = vmul.f32 %v769, %v542
    %772 = vrot.lane.b32.xlu0 %v542, 64
    %v773 = vpop.permute.xlu0 %772
    %v775 = vadd.f32 %v770, %v773
    %s776 = scalar_lea.vmem [#allocation10], 64
    %v777 = vld [vmem:[%s776] sm:$0xff]
    %v778 = vld [vmem:[%s776 + $0x8] sm:$0xff]
    %v779 = vld [vmem:[%s776 + $0x10] sm:$0xff]
    %v780 = vld [vmem:[%s776 + $0x18] sm:$0xff]
    %v781 = vld [vmem:[%s776 + $0x20] sm:$0xff]
    %v782 = vld [vmem:[%s776 + $0x28] sm:$0xff]
    %v783 = vld [vmem:[%s776 + $0x30] sm:$0xff]
    %v784 = vld [vmem:[%s776 + $0x38] sm:$0xff]
    %s785 = scalar_lea.vmem [#allocation11], 1
    %v786 = vld [vmem:[%s785] sm:$0x1]
    %v788 = vlaneseq
    %v789 = vshrl.u32 %v788, 7
    %v790 = vsub.s32 0, %v789
    %v791 = vrot.slane %v786, %v790
    %v794 = vsel %vm544, %v775, 0
    %796 = vmatprep.subr.mxu0 0.0
    %797 = vmatpush1.msra.mxu0 %v777
    %798 = vmatprep.subr.mxu0 0.0
    %799 = vmatpush1.msra.mxu0 %v778
    %800 = vmatprep.subr.mxu0 0.0
    %801 = vmatpush1.msra.mxu0 %v779
    %802 = vmatprep.subr.mxu0 0.0
    %803 = vmatpush1.msra.mxu0 %v780
    %804 = vmatprep.subr.mxu0 0.0
    %805 = vmatpush1.msra.mxu0 %v781
    %806 = vmatprep.subr.mxu0 0.0
    %807 = vmatpush1.msra.mxu0 %v782
    %808 = vmatprep.subr.mxu0 0.0
    %809 = vmatpush1.msra.mxu0 %v783
    %810 = vmatprep.subr.mxu0 0.0
    %811 = vmatpush1.msra.mxu0 %v784
    %812 = vmatprep.subr.mxu0 0.0
    %813 = vmatpush1.msra.mxu0 0.0
    %814 = vmatprep.subr.mxu0 0.0
    %815 = vmatpush1.msra.mxu0 0.0
    %816 = vmatprep.subr.mxu0 0.0
    %817 = vmatpush1.msra.mxu0 0.0
    %818 = vmatprep.subr.mxu0 0.0
    %819 = vmatpush1.msra.mxu0 0.0
    %820 = vmatprep.subr.mxu0 0.0
    %821 = vmatpush1.msra.mxu0 0.0
    %822 = vmatprep.subr.mxu0 0.0
    %823 = vmatpush1.msra.mxu0 0.0
    %824 = vmatprep.subr.mxu0 0.0
    %825 = vmatpush1.msra.mxu0 0.0
    %826 = vmatprep.subr.mxu0 0.0
    %827 = vmatpush1.msra.mxu0 0.0
    %828 = vmatprep.subr.mxu0 0.0
    %829 = vmatpush1.msra.mxu0 0.0
    %830 = vmatprep.subr.mxu0 0.0
    %831 = vmatpush1.msra.mxu0 0.0
    %832 = vmatprep.subr.mxu0 0.0
    %833 = vmatpush1.msra.mxu0 0.0
    %834 = vmatprep.subr.mxu0 0.0
    %835 = vmatpush1.msra.mxu0 0.0
    %836 = vmatprep.subr.mxu0 0.0
    %837 = vmatpush1.msra.mxu0 0.0
    %838 = vmatprep.subr.mxu0 0.0
    %839 = vmatpush1.msra.mxu0 0.0
    %840 = vmatprep.subr.mxu0 0.0
    %841 = vmatpush1.msra.mxu0 0.0
    %842 = vmatprep.subr.mxu0 0.0
    %843 = vmatpush1.msra.mxu0 0.0
    %844 = vmatprep.subr.mxu0 0.0
    %845 = vmatpush1.msra.mxu0 0.0
    %846 = vmatprep.subr.mxu0 0.0
    %847 = vmatpush1.msra.mxu0 0.0
    %848 = vmatprep.subr.mxu0 0.0
    %849 = vmatpush1.msra.mxu0 0.0
    %850 = vmatprep.subr.mxu0 0.0
    %851 = vmatpush1.msra.mxu0 0.0
    %852 = vmatprep.subr.mxu0 0.0
    %853 = vmatpush1.msra.mxu0 0.0
    %854 = vmatprep.subr.mxu0 0.0
    %855 = vmatpush1.msra.mxu0 0.0
    %856 = vmatprep.subr.mxu0 0.0
    %857 = vmatpush1.msra.mxu0 0.0
    %858 = vmatprep.subr.mxu0 0.0
    %859 = vmatpush1.msra.mxu0 0.0
    %860 = vmatprep.mubr.f32.mxu0 0.0
    %861 = vmatmul.mubr.f32.gmra.mrb[0].mxu0 %v794
    %v862 = vpop.f32.mrb[0].mxu0
    %v863 = vadd.f32 %v791, %v862
    %v864 = vpop.f32.mrb[0].mxu0
    %865 = vdwg.mxu0
    %v866 = vmax.f32 %v863, 0.0
    %s867 = scalar_lea.vmem [#allocation13], 64
    %v868 = vld [vmem:[%s867] sm:$0xff]
    %v869 = vld [vmem:[%s867 + $0x8] sm:$0xff]
    %v870 = vld [vmem:[%s867 + $0x10] sm:$0xff]
    %v871 = vld [vmem:[%s867 + $0x18] sm:$0xff]
    %v872 = vld [vmem:[%s867 + $0x20] sm:$0xff]
    %v873 = vld [vmem:[%s867 + $0x28] sm:$0xff]
    %v874 = vld [vmem:[%s867 + $0x30] sm:$0xff]
    %v875 = vld [vmem:[%s867 + $0x38] sm:$0xff]
    %s876 = scalar_lea.vmem [#allocation14], 1
    %v877 = vld [vmem:[%s876] sm:$0x1]
    %v879 = vlaneseq
    %v880 = vshrl.u32 %v879, 7
    %v881 = vsub.s32 0, %v880
    %v882 = vrot.slane %v877, %v881
    %v885 = vsel %vm544, %v866, 0
    %887 = vmatprep.subr.mxu0 0.0
    %888 = vmatpush1.msra.mxu0 %v868
    %889 = vmatprep.subr.mxu0 0.0
    %890 = vmatpush1.msra.mxu0 %v869
    %891 = vmatprep.subr.mxu0 0.0
    %892 = vmatpush1.msra.mxu0 %v870
    %893 = vmatprep.subr.mxu0 0.0
    %894 = vmatpush1.msra.mxu0 %v871
    %895 = vmatprep.subr.mxu0 0.0
    %896 = vmatpush1.msra.mxu0 %v872
    %897 = vmatprep.subr.mxu0 0.0
    %898 = vmatpush1.msra.mxu0 %v873
    %899 = vmatprep.subr.mxu0 0.0
    %900 = vmatpush1.msra.mxu0 %v874
    %901 = vmatprep.subr.mxu0 0.0
    %902 = vmatpush1.msra.mxu0 %v875
    %903 = vmatprep.subr.mxu0 0.0
    %904 = vmatpush1.msra.mxu0 0.0
    %905 = vmatprep.subr.mxu0 0.0
    %906 = vmatpush1.msra.mxu0 0.0
    %907 = vmatprep.subr.mxu0 0.0
    %908 = vmatpush1.msra.mxu0 0.0
    %909 = vmatprep.subr.mxu0 0.0
    %910 = vmatpush1.msra.mxu0 0.0
    %911 = vmatprep.subr.mxu0 0.0
    %912 = vmatpush1.msra.mxu0 0.0
    %913 = vmatprep.subr.mxu0 0.0
    %914 = vmatpush1.msra.mxu0 0.0
    %915 = vmatprep.subr.mxu0 0.0
    %916 = vmatpush1.msra.mxu0 0.0
    %917 = vmatprep.subr.mxu0 0.0
    %918 = vmatpush1.msra.mxu0 0.0
    %919 = vmatprep.subr.mxu0 0.0
    %920 = vmatpush1.msra.mxu0 0.0
    %921 = vmatprep.subr.mxu0 0.0
    %922 = vmatpush1.msra.mxu0 0.0
    %923 = vmatprep.subr.mxu0 0.0
    %924 = vmatpush1.msra.mxu0 0.0
    %925 = vmatprep.subr.mxu0 0.0
    %926 = vmatpush1.msra.mxu0 0.0
    %927 = vmatprep.subr.mxu0 0.0
    %928 = vmatpush1.msra.mxu0 0.0
    %929 = vmatprep.subr.mxu0 0.0
    %930 = vmatpush1.msra.mxu0 0.0
    %931 = vmatprep.subr.mxu0 0.0
    %932 = vmatpush1.msra.mxu0 0.0
    %933 = vmatprep.subr.mxu0 0.0
    %934 = vmatpush1.msra.mxu0 0.0
    %935 = vmatprep.subr.mxu0 0.0
    %936 = vmatpush1.msra.mxu0 0.0
    %937 = vmatprep.subr.mxu0 0.0
    %938 = vmatpush1.msra.mxu0 0.0
    %939 = vmatprep.subr.mxu0 0.0
    %940 = vmatpush1.msra.mxu0 0.0
    %941 = vmatprep.subr.mxu0 0.0
    %942 = vmatpush1.msra.mxu0 0.0
    %943 = vmatprep.subr.mxu0 0.0
    %944 = vmatpush1.msra.mxu0 0.0
    %945 = vmatprep.subr.mxu0 0.0
    %946 = vmatpush1.msra.mxu0 0.0
    %947 = vmatprep.subr.mxu0 0.0
    %948 = vmatpush1.msra.mxu0 0.0
    %949 = vmatprep.subr.mxu0 0.0
    %950 = vmatpush1.msra.mxu0 0.0
    %951 = vmatprep.mubr.f32.mxu0 0.0
    %952 = vmatmul.mubr.f32.gmra.mrb[0].mxu0 %v885
    %v953 = vpop.f32.mrb[0].mxu0
    %v954 = vadd.f32 %v882, %v953
    %v955 = vpop.f32.mrb[0].mxu0
    %956 = vdwg.mxu0
    %s957 = scalar_lea.vmem [#allocation16], 1
    %v958 = vld [vmem:[%s957] sm:$0x1]
    %v960 = vlaneseq
    %v961 = vshrl.u32 %v960, 7
    %v962 = vsub.s32 0, %v961
    %v963 = vrot.slane %v958, %v962
    %v965 = vmul.f32 %v954, %v963
    %v966 = vadd.f32 %v753, %v965
    %v967 = vld [vmem:[%s12] sm:$0xff]
    %v968 = vld [vmem:[%s12 + $0x8] sm:$0xff]
    %v969 = vld [vmem:[%s12 + $0x10] sm:$0xff]
    %v970 = vld [vmem:[%s12 + $0x18] sm:$0xff]
    %v971 = vld [vmem:[%s12 + $0x20] sm:$0xff]
    %v972 = vld [vmem:[%s12 + $0x28] sm:$0xff]
    %v973 = vld [vmem:[%s12 + $0x30] sm:$0xff]
    %v974 = vld [vmem:[%s12 + $0x38] sm:$0xff]
    %v975 = vld [vmem:[%s13] sm:$0x1]
    %v977 = vlaneseq
    %v978 = vshrl.u32 %v977, 7
    %v979 = vsub.s32 0, %v978
    %v980 = vrot.slane %v975, %v979
    %v983 = vsel %vm544, %v966, 0
    %985 = vmatprep.subr.mxu0 0.0
    %986 = vmatpush1.msra.mxu0 %v967
    %987 = vmatprep.subr.mxu0 0.0
    %988 = vmatpush1.msra.mxu0 %v968
    %989 = vmatprep.subr.mxu0 0.0
    %990 = vmatpush1.msra.mxu0 %v969
    %991 = vmatprep.subr.mxu0 0.0
    %992 = vmatpush1.msra.mxu0 %v970
    %993 = vmatprep.subr.mxu0 0.0
    %994 = vmatpush1.msra.mxu0 %v971
    %995 = vmatprep.subr.mxu0 0.0
    %996 = vmatpush1.msra.mxu0 %v972
    %997 = vmatprep.subr.mxu0 0.0
    %998 = vmatpush1.msra.mxu0 %v973
    %999 = vmatprep.subr.mxu0 0.0
    %1000 = vmatpush1.msra.mxu0 %v974
    %1001 = vmatprep.subr.mxu0 0.0
    %1002 = vmatpush1.msra.mxu0 0.0
    %1003 = vmatprep.subr.mxu0 0.0
    %1004 = vmatpush1.msra.mxu0 0.0
    %1005 = vmatprep.subr.mxu0 0.0
    %1006 = vmatpush1.msra.mxu0 0.0
    %1007 = vmatprep.subr.mxu0 0.0
    %1008 = vmatpush1.msra.mxu0 0.0
    %1009 = vmatprep.subr.mxu0 0.0
    %1010 = vmatpush1.msra.mxu0 0.0
    %1011 = vmatprep.subr.mxu0 0.0
    %1012 = vmatpush1.msra.mxu0 0.0
    %1013 = vmatprep.subr.mxu0 0.0
    %1014 = vmatpush1.msra.mxu0 0.0
    %1015 = vmatprep.subr.mxu0 0.0
    %1016 = vmatpush1.msra.mxu0 0.0
    %1017 = vmatprep.subr.mxu0 0.0
    %1018 = vmatpush1.msra.mxu0 0.0
    %1019 = vmatprep.subr.mxu0 0.0
    %1020 = vmatpush1.msra.mxu0 0.0
    %1021 = vmatprep.subr.mxu0 0.0
    %1022 = vmatpush1.msra.mxu0 0.0
    %1023 = vmatprep.subr.mxu0 0.0
    %1024 = vmatpush1.msra.mxu0 0.0
    %1025 = vmatprep.subr.mxu0 0.0
    %1026 = vmatpush1.msra.mxu0 0.0
    %1027 = vmatprep.subr.mxu0 0.0
    %1028 = vmatpush1.msra.mxu0 0.0
    %1029 = vmatprep.subr.mxu0 0.0
    %1030 = vmatpush1.msra.mxu0 0.0
    %1031 = vmatprep.subr.mxu0 0.0
    %1032 = vmatpush1.msra.mxu0 0.0
    %1033 = vmatprep.subr.mxu0 0.0
    %1034 = vmatpush1.msra.mxu0 0.0
    %1035 = vmatprep.subr.mxu0 0.0
    %1036 = vmatpush1.msra.mxu0 0.0
    %1037 = vmatprep.subr.mxu0 0.0
    %1038 = vmatpush1.msra.mxu0 0.0
    %1039 = vmatprep.subr.mxu0 0.0
    %1040 = vmatpush1.msra.mxu0 0.0
    %1041 = vmatprep.subr.mxu0 0.0
    %1042 = vmatpush1.msra.mxu0 0.0
    %1043 = vmatprep.subr.mxu0 0.0
    %1044 = vmatpush1.msra.mxu0 0.0
    %1045 = vmatprep.subr.mxu0 0.0
    %1046 = vmatpush1.msra.mxu0 0.0
    %1047 = vmatprep.subr.mxu0 0.0
    %1048 = vmatpush1.msra.mxu0 0.0
    %1049 = vmatprep.mubr.f32.mxu0 0.0
    %1050 = vmatmul.mubr.f32.gmra.mrb[0].mxu0 %v983
    %v1051 = vpop.f32.mrb[0].mxu0
    %v1052 = vadd.f32 %v980, %v1051
    %v1053 = vpop.f32.mrb[0].mxu0
    %1054 = vdwg.mxu0
    %1055 = vst [vmem:[#allocation17] sm:$0xff] %v1052
    // Predicated region
    $region94: #{tpu_custom_call.1} parent=1 // pred_check
      _
    $region95: #{tpu_custom_call.1} parent=1 // pred_check_branch
      %1057 = sbr.rel (0) target = $region97
    $region96: #{tpu_custom_call.1} parent=1 // pred_region
      %s1059 = ssub.s32 128, 128
      %1060 = vsyncadd [#allocation4], %s1059
      %s1062 = sshll.u32 [#allocation17], 4
      %s1063 = int_to_ptr.vmem [resolvable:$true] %s1062
      %1065 = dma.vmem_to_hbm [thread:$0]  %s1063, 128, %s14, [#allocation4]
    $region97: #{tpu_custom_call.1} parent=1 // pred_fallthru
      _
    // Predicated region
    $region98: #{tpu_custom_call.1} parent=1 // pred_check
      _
    $region99: #{tpu_custom_call.1} parent=1 // pred_check_branch
      %1067 = sbr.rel (0) target = $region101
    $region100: #{tpu_custom_call.1} parent=1 // pred_region
      %1068 = dma.done [#allocation4], 128
    $region101: #{tpu_custom_call.1} parent=1 // pred_fallthru
      _
    %1069 = vsyncpa [#allocation3], 1
    %1070 = vsyncpa [#allocation6], 1
    %1071 = vsyncpa [#allocation9], 1
    %1072 = vsyncpa [#allocation12], 1
    %1073 = vsyncpa [#allocation15], 1
    %1074 = vsyncpa [#allocation4], 1

</llo_original>
